<compile_context>
chip_gen: v7x
topology: tpu7x:2x2x1
jax: 0.10.0
libtpu: 0.0.40
codegen_flags: <defaults>
</compile_context>

<pallas_src>
import functools

import jax
import jax.numpy as jnp
from jax import lax
from jax.experimental import pallas as pl
from jax.experimental.pallas import tpu as pltpu


# ---------------------------------------------------------------------------
# Fused decoder kernel (single grid step, everything resident in VMEM).
# ---------------------------------------------------------------------------
def _decoder_kernel(mask_ref, xup_ref, down_ref,
                    w0_ref, g0_ref, b0_ref,
                    w1_ref, g1_ref, b1_ref,
                    w2_ref, g2_ref, b2_ref,
                    out_ref, hpad_ref, *, H, W, eps):
    """Fused decoder body.

    mask_ref : (9, L)  f32   0/1 validity mask per 3x3 tap (edge zero-padding)
    xup_ref  : (Cx, L) f32   upsampled low-res features, pixels on lanes
    down_ref : (Cd, L) f32   skip features, pixels on lanes
    w*_ref   : (Cout, 9*Cin) f32   conv weights, K ordered as (dy, dx, ci)
    g*/b*    : (Cout, 1) f32       BN gamma / beta
    out_ref  : (Cout, L) f32       final activations (lane-dense)
    hpad_ref : (Cmax, L + 2*(W+1)) f32 VMEM scratch: activation + flat halo
    """
    L = out_ref.shape[1]
    S = W + 1                      # halo width on the flattened pixel axis

    # Zero the scratch once (trivial one-time cost): the first/last S columns
    # are the halo for the global top/bottom rows; interior row/image edges
    # are handled by the per-tap masks.
    hpad_ref[...] = jnp.zeros_like(hpad_ref)

    # Fused channel concat: write both inputs straight into the scratch interior.
    cx = xup_ref.shape[0]
    cd = down_ref.shape[0]
    hpad_ref[0:cx, S:S + L] = xup_ref[...]
    hpad_ref[cx:cx + cd, S:S + L] = down_ref[...]

    # Per-tap 0/1 edge masks, loaded once and reused by all three layers.
    edge = [mask_ref[k:k + 1, :] for k in range(9)]

    inv_n = 1.0 / L

    def conv_bn_relu(cin, w_ref, g_ref, b_ref):
        # ---- 3x3 conv as a single (Cout, 9*Cin) @ (9*Cin, L) MXU matmul ----
        taps = []
        for dy in range(3):
            for dx in range(3):
                s = (dy - 1) * W + (dx - 1)
                t = hpad_ref[0:cin, S + s:S + s + L]      # shifted (Cin, L) view
                if not (dy == 1 and dx == 1):
                    t = t * edge[dy * 3 + dx]             # zero-pad row/image edges
                taps.append(t)
        patches = jnp.concatenate(taps, axis=0)           # (9*Cin, L) im2col
        conv = jnp.dot(w_ref[...], patches,
                       preferred_element_type=jnp.float32)  # (Cout, L)

        # ---- BatchNorm (training-mode batch stats, biased variance) + ReLU ----
        mean = jnp.sum(conv, axis=1, keepdims=True) * inv_n
        cen = conv - mean
        var = jnp.sum(cen * cen, axis=1, keepdims=True) * inv_n   # centered, stable
        scale = g_ref[...] * lax.rsqrt(var + eps)                 # EUP rsqrt
        return jnp.maximum(cen * scale + b_ref[...], 0.0)         # (Cout, L)

    h = conv_bn_relu(cx + cd, w0_ref, g0_ref, b0_ref)
    cout = h.shape[0]
    hpad_ref[0:cout, S:S + L] = h
    h = conv_bn_relu(cout, w1_ref, g1_ref, b1_ref)
    hpad_ref[0:cout, S:S + L] = h
    h = conv_bn_relu(cout, w2_ref, g2_ref, b2_ref)
    out_ref[...] = h


# ---------------------------------------------------------------------------
# Wrapper
# ---------------------------------------------------------------------------
def _edge_masks(N, H, W):
    """(9, N*H*W) float 0/1 masks: tap (dy,dx) valid iff (y+dy-1, x+dx-1) in-image."""
    yy = jnp.arange(H).reshape(H, 1)
    xx = jnp.arange(W).reshape(1, W)
    rows = []
    for dy in range(3):
        for dx in range(3):
            ok = ((yy + dy - 1 >= 0) & (yy + dy - 1 <= H - 1) &
                  (xx + dx - 1 >= 0) & (xx + dx - 1 <= W - 1))
            rows.append(jnp.broadcast_to(ok, (H, W)))
    m = jnp.stack(rows, axis=0).astype(jnp.float32)                 # (9, H, W)
    m = jnp.tile(m.reshape(9, 1, H, W), (1, N, 1, 1)).reshape(9, N * H * W)
    return m


@jax.jit
def decoder_forward(x_nchw, down_nchw, params):
    x = x_nchw.astype(jnp.float32)
    down = down_nchw.astype(jnp.float32)
    N, cd, H, W = down.shape
    cx = x.shape[1]
    L = N * H * W

    # Bilinear upsample to the skip-tensor size (half-pixel == align_corners=False,
    # the behavior of F.upsample(mode='bilinear')).
    # TODO(synk): upsample stays in XLA; only the conv/BN/ReLU hot path is Pallas.
    x_up = jax.image.resize(x, (N, cx, H, W), method="bilinear")

    # NCHW -> channels on sublanes, flattened pixels (n,y,x) on the lane axis.
    xup_f = jnp.transpose(x_up, (1, 0, 2, 3)).reshape(cx, L)
    down_f = jnp.transpose(down, (1, 0, 2, 3)).reshape(cd, L)

    masks = _edge_masks(N, H, W)

    # Conv weights (OIHW) -> (Cout, 9*Cin) matrices with K ordered as (dy, dx, ci).
    flat = []
    cins = []
    for (w, gamma, beta) in params:
        cout, cin = w.shape[0], w.shape[1]
        cins.append(cin)
        wmat = jnp.transpose(w, (0, 2, 3, 1)).reshape(cout, 9 * cin)
        flat += [wmat,
                 gamma.reshape(cout, 1).astype(jnp.float32),
                 beta.reshape(cout, 1).astype(jnp.float32)]
    cout = params[-1][0].shape[0]
    cmax = max(cins + [cout])

    def full(shape):
        n = len(shape)
        return pl.BlockSpec(shape, lambda i: (0,) * n)

    args = [masks, xup_f, down_f] + flat
    out_flat = pl.pallas_call(
        functools.partial(_decoder_kernel, H=H, W=W, eps=1e-5),
        out_shape=jax.ShapeDtypeStruct((cout, L), jnp.float32),
        grid=(1,),                                   # whole batch in one step
        in_specs=[full(a.shape) for a in args],
        out_specs=full((cout, L)),
        scratch_shapes=[pltpu.VMEM((cmax, L + 2 * (W + 1)), jnp.float32)],
        compiler_params=pltpu.CompilerParams(
            dimension_semantics=("arbitrary",)),
    )(*args)

    # (Cout, N*H*W) -> NCHW
    return jnp.transpose(out_flat.reshape(cout, N, H, W), (1, 0, 2, 3))


def init_decoder_params(key, xbigchannels, xchannels, ychannels):
    """Per-layer (conv weight OIHW, bn gamma, bn beta)."""
    cins = [xbigchannels + xchannels, ychannels, ychannels]
    params = []
    for cin in cins:
        key, kw, kg, kb = jax.random.split(key, 4)
        w = 0.1 * jax.random.normal(kw, (ychannels, cin, 3, 3), jnp.float32)
        gamma = 1.0 + 0.1 * jax.random.normal(kg, (ychannels,), jnp.float32)
        beta = 0.1 * jax.random.normal(kb, (ychannels,), jnp.float32)
        params.append((w, gamma, beta))
    return params


# ---------------------------------------------------------------------------
# Pure-XLA reference (for a correctness check)
# ---------------------------------------------------------------------------
def _reference_decoder(x, down, params, eps=1e-5):
    x = x.astype(jnp.float32)
    down = down.astype(jnp.float32)
    N, _, H, W = down.shape
    xu = jax.image.resize(x, (N, x.shape[1], H, W), method="bilinear")
    h = jnp.concatenate([xu, down], axis=1)
    for (w, gamma, beta) in params:
        h = lax.conv_general_dilated(
            h, w, window_strides=(1, 1), padding=((1, 1), (1, 1)),
            dimension_numbers=("NCHW", "OIHW", "NCHW"),
            precision=lax.Precision.HIGHEST)
        mean = jnp.mean(h, axis=(0, 2, 3), keepdims=True)
        var = jnp.mean((h - mean) ** 2, axis=(0, 2, 3), keepdims=True)
        g = gamma.reshape(1, -1, 1, 1)
        b = beta.reshape(1, -1, 1, 1)
        h = jnp.maximum((h - mean) * (g * lax.rsqrt(var + eps)) + b, 0.0)
    return h


if __name__ == "__main__":
    key = jax.random.PRNGKey(0)
    k_x, k_down, k_p = jax.random.split(key, 3)

    # Decoder(xbigchannels=4, xchannels=4, ychannels=8)
    xbig, xch, ych = 4, 4, 8
    N = 2
    x = jax.random.normal(k_x, (N, xbig, 8, 8), jnp.float32)          # low-res feature
    down_tensor = jax.random.normal(k_down, (N, xch, 16, 16), jnp.float32)

    params = init_decoder_params(k_p, xbig, xch, ych)

    out = decoder_forward(x, down_tensor, params)
    out = jax.block_until_ready(out)
    assert out.shape == (N, ych, 16, 16), out.shape

    # Correctness check vs. pure-XLA reference (loose tol for MXU f32 path).
    ref = _reference_decoder(x, down_tensor, params)
    max_err = float(jnp.max(jnp.abs(out - ref)))
    assert max_err < 5e-2, f"max abs error vs reference: {max_err}"

    print("KERNEL_OK")
</pallas_src>

<mosaic_0001>
module attributes {stable_mosaic.version = 11 : i64} {
  func.func @_decoder_kernel(%arg0: i32, %arg1: memref<9x512xf32, #tpu.memory_space<vmem>>, %arg2: memref<4x512xf32, #tpu.memory_space<vmem>>, %arg3: memref<4x512xf32, #tpu.memory_space<vmem>>, %arg4: memref<8x72xf32, #tpu.memory_space<vmem>>, %arg5: memref<8x1xf32, #tpu.memory_space<vmem>>, %arg6: memref<8x1xf32, #tpu.memory_space<vmem>>, %arg7: memref<8x72xf32, #tpu.memory_space<vmem>>, %arg8: memref<8x1xf32, #tpu.memory_space<vmem>>, %arg9: memref<8x1xf32, #tpu.memory_space<vmem>>, %arg10: memref<8x72xf32, #tpu.memory_space<vmem>>, %arg11: memref<8x1xf32, #tpu.memory_space<vmem>>, %arg12: memref<8x1xf32, #tpu.memory_space<vmem>>, %arg13: memref<8x512xf32, #tpu.memory_space<vmem>>, %arg14: memref<8x546xf32, #tpu.memory_space<vmem>>) attributes {dimension_semantics = [#tpu.dimension_semantics<arbitrary>], iteration_bounds = array<i64: 1>, scalar_prefetch = 0 : i64, scratch_operands = 1 : i64, tpu.core_type = #tpu.core_type<tc>, window_params = [{pipeline_mode = #tpu.pipeline_mode<synchronous>, transform_indices = @transform_0, window_bounds = array<i64: 9, 512>}, {pipeline_mode = #tpu.pipeline_mode<synchronous>, transform_indices = @transform_1, window_bounds = array<i64: 4, 512>}, {pipeline_mode = #tpu.pipeline_mode<synchronous>, transform_indices = @transform_2, window_bounds = array<i64: 4, 512>}, {pipeline_mode = #tpu.pipeline_mode<synchronous>, transform_indices = @transform_3, window_bounds = array<i64: 8, 72>}, {pipeline_mode = #tpu.pipeline_mode<synchronous>, transform_indices = @transform_4, window_bounds = array<i64: 8, 1>}, {pipeline_mode = #tpu.pipeline_mode<synchronous>, transform_indices = @transform_5, window_bounds = array<i64: 8, 1>}, {pipeline_mode = #tpu.pipeline_mode<synchronous>, transform_indices = @transform_6, window_bounds = array<i64: 8, 72>}, {pipeline_mode = #tpu.pipeline_mode<synchronous>, transform_indices = @transform_7, window_bounds = array<i64: 8, 1>}, {pipeline_mode = #tpu.pipeline_mode<synchronous>, transform_indices = @transform_8, window_bounds = array<i64: 8, 1>}, {pipeline_mode = #tpu.pipeline_mode<synchronous>, transform_indices = @transform_9, window_bounds = array<i64: 8, 72>}, {pipeline_mode = #tpu.pipeline_mode<synchronous>, transform_indices = @transform_10, window_bounds = array<i64: 8, 1>}, {pipeline_mode = #tpu.pipeline_mode<synchronous>, transform_indices = @transform_11, window_bounds = array<i64: 8, 1>}, {pipeline_mode = #tpu.pipeline_mode<synchronous>, transform_indices = @transform_12, window_bounds = array<i64: 8, 512>}]} {
    %cst = arith.constant 0.000000e+00 : f32
    %0 = vector.broadcast %cst : f32 to vector<8x546xf32>
    %c0 = arith.constant 0 : index
    %c0_0 = arith.constant 0 : index
    %1 = vector.load %arg14[%c0, %c0_0] : memref<8x546xf32, #tpu.memory_space<vmem>>, vector<8x546xf32>
    tpu.vector_store %arg14[%c0, %c0_0], %0 {strides = array<i32>} : memref<8x546xf32, #tpu.memory_space<vmem>>, vector<8x546xf32>,
    %c0_1 = arith.constant 0 : index
    %c0_2 = arith.constant 0 : index
    %2 = vector.load %arg2[%c0_1, %c0_2] : memref<4x512xf32, #tpu.memory_space<vmem>>, vector<4x512xf32>
    %c0_3 = arith.constant 0 : index
    %c17 = arith.constant 17 : index
    %3 = vector.load %arg14[%c0_3, %c17] : memref<8x546xf32, #tpu.memory_space<vmem>>, vector<4x512xf32>
    tpu.vector_store %arg14[%c0_3, %c17], %2 {strides = array<i32>} : memref<8x546xf32, #tpu.memory_space<vmem>>, vector<4x512xf32>,
    %c0_4 = arith.constant 0 : index
    %c0_5 = arith.constant 0 : index
    %4 = vector.load %arg3[%c0_4, %c0_5] : memref<4x512xf32, #tpu.memory_space<vmem>>, vector<4x512xf32>
    %c4 = arith.constant 4 : index
    %c17_6 = arith.constant 17 : index
    %5 = vector.load %arg14[%c4, %c17_6] : memref<8x546xf32, #tpu.memory_space<vmem>>, vector<4x512xf32>
    tpu.vector_store %arg14[%c4, %c17_6], %4 {strides = array<i32>} : memref<8x546xf32, #tpu.memory_space<vmem>>, vector<4x512xf32>,
    %c0_7 = arith.constant 0 : index
    %c0_8 = arith.constant 0 : index
    %6 = vector.load %arg1[%c0_7, %c0_8] : memref<9x512xf32, #tpu.memory_space<vmem>>, vector<1x512xf32>
    %c1 = arith.constant 1 : index
    %c0_9 = arith.constant 0 : index
    %7 = vector.load %arg1[%c1, %c0_9] : memref<9x512xf32, #tpu.memory_space<vmem>>, vector<1x512xf32>
    %c2 = arith.constant 2 : index
    %c0_10 = arith.constant 0 : index
    %8 = vector.load %arg1[%c2, %c0_10] : memref<9x512xf32, #tpu.memory_space<vmem>>, vector<1x512xf32>
    %c3 = arith.constant 3 : index
    %c0_11 = arith.constant 0 : index
    %9 = vector.load %arg1[%c3, %c0_11] : memref<9x512xf32, #tpu.memory_space<vmem>>, vector<1x512xf32>
    %c5 = arith.constant 5 : index
    %c0_12 = arith.constant 0 : index
    %10 = vector.load %arg1[%c5, %c0_12] : memref<9x512xf32, #tpu.memory_space<vmem>>, vector<1x512xf32>
    %c6 = arith.constant 6 : index
    %c0_13 = arith.constant 0 : index
    %11 = vector.load %arg1[%c6, %c0_13] : memref<9x512xf32, #tpu.memory_space<vmem>>, vector<1x512xf32>
    %c7 = arith.constant 7 : index
    %c0_14 = arith.constant 0 : index
    %12 = vector.load %arg1[%c7, %c0_14] : memref<9x512xf32, #tpu.memory_space<vmem>>, vector<1x512xf32>
    %c8 = arith.constant 8 : index
    %c0_15 = arith.constant 0 : index
    %13 = vector.load %arg1[%c8, %c0_15] : memref<9x512xf32, #tpu.memory_space<vmem>>, vector<1x512xf32>
    %c0_16 = arith.constant 0 : index
    %c0_17 = arith.constant 0 : index
    %14 = vector.load %arg14[%c0_16, %c0_17] : memref<8x546xf32, #tpu.memory_space<vmem>>, vector<8x512xf32>
    %15 = vector.broadcast %6 : vector<1x512xf32> to vector<8x512xf32>
    %16 = arith.mulf %14, %15 : vector<8x512xf32>
    %c0_18 = arith.constant 0 : index
    %c1_19 = arith.constant 1 : index
    %17 = vector.load %arg14[%c0_18, %c1_19] : memref<8x546xf32, #tpu.memory_space<vmem>>, vector<8x512xf32>
    %18 = vector.broadcast %7 : vector<1x512xf32> to vector<8x512xf32>
    %19 = arith.mulf %17, %18 : vector<8x512xf32>
    %c0_20 = arith.constant 0 : index
    %c2_21 = arith.constant 2 : index
    %20 = vector.load %arg14[%c0_20, %c2_21] : memref<8x546xf32, #tpu.memory_space<vmem>>, vector<8x512xf32>
    %21 = vector.broadcast %8 : vector<1x512xf32> to vector<8x512xf32>
    %22 = arith.mulf %20, %21 : vector<8x512xf32>
    %c0_22 = arith.constant 0 : index
    %c16 = arith.constant 16 : index
    %23 = vector.load %arg14[%c0_22, %c16] : memref<8x546xf32, #tpu.memory_space<vmem>>, vector<8x512xf32>
    %24 = vector.broadcast %9 : vector<1x512xf32> to vector<8x512xf32>
    %25 = arith.mulf %23, %24 : vector<8x512xf32>
    %c0_23 = arith.constant 0 : index
    %c17_24 = arith.constant 17 : index
    %26 = vector.load %arg14[%c0_23, %c17_24] : memref<8x546xf32, #tpu.memory_space<vmem>>, vector<8x512xf32>
    %c0_25 = arith.constant 0 : index
    %c18 = arith.constant 18 : index
    %27 = vector.load %arg14[%c0_25, %c18] : memref<8x546xf32, #tpu.memory_space<vmem>>, vector<8x512xf32>
    %28 = vector.broadcast %10 : vector<1x512xf32> to vector<8x512xf32>
    %29 = arith.mulf %27, %28 : vector<8x512xf32>
    %c0_26 = arith.constant 0 : index
    %c32 = arith.constant 32 : index
    %30 = vector.load %arg14[%c0_26, %c32] : memref<8x546xf32, #tpu.memory_space<vmem>>, vector<8x512xf32>
    %31 = vector.broadcast %11 : vector<1x512xf32> to vector<8x512xf32>
    %32 = arith.mulf %30, %31 : vector<8x512xf32>
    %c0_27 = arith.constant 0 : index
    %c33 = arith.constant 33 : index
    %33 = vector.load %arg14[%c0_27, %c33] : memref<8x546xf32, #tpu.memory_space<vmem>>, vector<8x512xf32>
    %34 = vector.broadcast %12 : vector<1x512xf32> to vector<8x512xf32>
    %35 = arith.mulf %33, %34 : vector<8x512xf32>
    %c0_28 = arith.constant 0 : index
    %c34 = arith.constant 34 : index
    %36 = vector.load %arg14[%c0_28, %c34] : memref<8x546xf32, #tpu.memory_space<vmem>>, vector<8x512xf32>
    %37 = vector.broadcast %13 : vector<1x512xf32> to vector<8x512xf32>
    %38 = arith.mulf %36, %37 : vector<8x512xf32>
    %39 = tpu.concatenate %16, %19, %22, %25, %26, %29, %32, %35, %38 in 0 : vector<8x512xf32>, vector<8x512xf32>, vector<8x512xf32>, vector<8x512xf32>, vector<8x512xf32>, vector<8x512xf32>, vector<8x512xf32>, vector<8x512xf32>, vector<8x512xf32> -> vector<72x512xf32>
    %c0_29 = arith.constant 0 : index
    %c0_30 = arith.constant 0 : index
    %40 = vector.load %arg4[%c0_29, %c0_30] : memref<8x72xf32, #tpu.memory_space<vmem>>, vector<8x72xf32>
    %cst_31 = arith.constant dense<0.000000e+00> : vector<8x512xf32>
    %41 = tpu.matmul %40, %39, %cst_31 {dimension_numbers = #tpu.dot_dimension_numbers<[1], [0], [0], [1], [0, 0, 1, 1], [], []>} : vector<8x72xf32>, vector<72x512xf32>, vector<8x512xf32> -> vector<8x512xf32>
    %cst_32 = arith.constant dense<0.000000e+00> : vector<8xf32>
    %42 = vector.multi_reduction <add>, %41, %cst_32 [1] : vector<8x512xf32> to vector<8xf32>
    %43 = vector.shape_cast %42 : vector<8xf32> to vector<8x1xf32>
    %cst_33 = arith.constant 0.001953125 : f32
    %44 = vector.broadcast %cst_33 : f32 to vector<8x1xf32>
    %45 = arith.mulf %43, %44 : vector<8x1xf32>
    %46 = vector.broadcast %45 : vector<8x1xf32> to vector<8x512xf32>
    %47 = arith.subf %41, %46 : vector<8x512xf32>
    %48 = arith.mulf %47, %47 : vector<8x512xf32>
    %cst_34 = arith.constant dense<0.000000e+00> : vector<8xf32>
    %49 = vector.multi_reduction <add>, %48, %cst_34 [1] : vector<8x512xf32> to vector<8xf32>
    %50 = vector.shape_cast %49 : vector<8xf32> to vector<8x1xf32>
    %cst_35 = arith.constant 0.001953125 : f32
    %51 = vector.broadcast %cst_35 : f32 to vector<8x1xf32>
    %52 = arith.mulf %50, %51 : vector<8x1xf32>
    %c0_36 = arith.constant 0 : index
    %c0_37 = arith.constant 0 : index
    %53 = vector.load %arg5[%c0_36, %c0_37] : memref<8x1xf32, #tpu.memory_space<vmem>>, vector<8x1xf32>
    %cst_38 = arith.constant 9.99999974E-6 : f32
    %54 = vector.broadcast %cst_38 : f32 to vector<8x1xf32>
    %55 = arith.addf %52, %54 : vector<8x1xf32>
    %56 = math.rsqrt %55 : vector<8x1xf32>
    %57 = arith.mulf %53, %56 : vector<8x1xf32>
    %58 = vector.broadcast %57 : vector<8x1xf32> to vector<8x512xf32>
    %59 = arith.mulf %47, %58 : vector<8x512xf32>
    %c0_39 = arith.constant 0 : index
    %c0_40 = arith.constant 0 : index
    %60 = vector.load %arg6[%c0_39, %c0_40] : memref<8x1xf32, #tpu.memory_space<vmem>>, vector<8x1xf32>
    %61 = vector.broadcast %60 : vector<8x1xf32> to vector<8x512xf32>
    %62 = arith.addf %59, %61 : vector<8x512xf32>
    %cst_41 = arith.constant 0.000000e+00 : f32
    %63 = vector.broadcast %cst_41 : f32 to vector<8x512xf32>
    %64 = arith.maximumf %62, %63 : vector<8x512xf32>
    %c0_42 = arith.constant 0 : index
    %c17_43 = arith.constant 17 : index
    %65 = vector.load %arg14[%c0_42, %c17_43] : memref<8x546xf32, #tpu.memory_space<vmem>>, vector<8x512xf32>
    tpu.vector_store %arg14[%c0_42, %c17_43], %64 {strides = array<i32>} : memref<8x546xf32, #tpu.memory_space<vmem>>, vector<8x512xf32>,
    %c0_44 = arith.constant 0 : index
    %c0_45 = arith.constant 0 : index
    %66 = vector.load %arg14[%c0_44, %c0_45] : memref<8x546xf32, #tpu.memory_space<vmem>>, vector<8x512xf32>
    %67 = vector.broadcast %6 : vector<1x512xf32> to vector<8x512xf32>
    %68 = arith.mulf %66, %67 : vector<8x512xf32>
    %c0_46 = arith.constant 0 : index
    %c1_47 = arith.constant 1 : index
    %69 = vector.load %arg14[%c0_46, %c1_47] : memref<8x546xf32, #tpu.memory_space<vmem>>, vector<8x512xf32>
    %70 = vector.broadcast %7 : vector<1x512xf32> to vector<8x512xf32>
    %71 = arith.mulf %69, %70 : vector<8x512xf32>
    %c0_48 = arith.constant 0 : index
    %c2_49 = arith.constant 2 : index
    %72 = vector.load %arg14[%c0_48, %c2_49] : memref<8x546xf32, #tpu.memory_space<vmem>>, vector<8x512xf32>
    %73 = vector.broadcast %8 : vector<1x512xf32> to vector<8x512xf32>
    %74 = arith.mulf %72, %73 : vector<8x512xf32>
    %c0_50 = arith.constant 0 : index
    %c16_51 = arith.constant 16 : index
    %75 = vector.load %arg14[%c0_50, %c16_51] : memref<8x546xf32, #tpu.memory_space<vmem>>, vector<8x512xf32>
    %76 = vector.broadcast %9 : vector<1x512xf32> to vector<8x512xf32>
    %77 = arith.mulf %75, %76 : vector<8x512xf32>
    %c0_52 = arith.constant 0 : index
    %c17_53 = arith.constant 17 : index
    %78 = vector.load %arg14[%c0_52, %c17_53] : memref<8x546xf32, #tpu.memory_space<vmem>>, vector<8x512xf32>
    %c0_54 = arith.constant 0 : index
    %c18_55 = arith.constant 18 : index
    %79 = vector.load %arg14[%c0_54, %c18_55] : memref<8x546xf32, #tpu.memory_space<vmem>>, vector<8x512xf32>
    %80 = vector.broadcast %10 : vector<1x512xf32> to vector<8x512xf32>
    %81 = arith.mulf %79, %80 : vector<8x512xf32>
    %c0_56 = arith.constant 0 : index
    %c32_57 = arith.constant 32 : index
    %82 = vector.load %arg14[%c0_56, %c32_57] : memref<8x546xf32, #tpu.memory_space<vmem>>, vector<8x512xf32>
    %83 = vector.broadcast %11 : vector<1x512xf32> to vector<8x512xf32>
    %84 = arith.mulf %82, %83 : vector<8x512xf32>
    %c0_58 = arith.constant 0 : index
    %c33_59 = arith.constant 33 : index
    %85 = vector.load %arg14[%c0_58, %c33_59] : memref<8x546xf32, #tpu.memory_space<vmem>>, vector<8x512xf32>
    %86 = vector.broadcast %12 : vector<1x512xf32> to vector<8x512xf32>
    %87 = arith.mulf %85, %86 : vector<8x512xf32>
    %c0_60 = arith.constant 0 : index
    %c34_61 = arith.constant 34 : index
    %88 = vector.load %arg14[%c0_60, %c34_61] : memref<8x546xf32, #tpu.memory_space<vmem>>, vector<8x512xf32>
    %89 = vector.broadcast %13 : vector<1x512xf32> to vector<8x512xf32>
    %90 = arith.mulf %88, %89 : vector<8x512xf32>
    %91 = tpu.concatenate %68, %71, %74, %77, %78, %81, %84, %87, %90 in 0 : vector<8x512xf32>, vector<8x512xf32>, vector<8x512xf32>, vector<8x512xf32>, vector<8x512xf32>, vector<8x512xf32>, vector<8x512xf32>, vector<8x512xf32>, vector<8x512xf32> -> vector<72x512xf32>
    %c0_62 = arith.constant 0 : index
    %c0_63 = arith.constant 0 : index
    %92 = vector.load %arg7[%c0_62, %c0_63] : memref<8x72xf32, #tpu.memory_space<vmem>>, vector<8x72xf32>
    %cst_64 = arith.constant dense<0.000000e+00> : vector<8x512xf32>
    %93 = tpu.matmul %92, %91, %cst_64 {dimension_numbers = #tpu.dot_dimension_numbers<[1], [0], [0], [1], [0, 0, 1, 1], [], []>} : vector<8x72xf32>, vector<72x512xf32>, vector<8x512xf32> -> vector<8x512xf32>
    %cst_65 = arith.constant dense<0.000000e+00> : vector<8xf32>
    %94 = vector.multi_reduction <add>, %93, %cst_65 [1] : vector<8x512xf32> to vector<8xf32>
    %95 = vector.shape_cast %94 : vector<8xf32> to vector<8x1xf32>
    %cst_66 = arith.constant 0.001953125 : f32
    %96 = vector.broadcast %cst_66 : f32 to vector<8x1xf32>
    %97 = arith.mulf %95, %96 : vector<8x1xf32>
    %98 = vector.broadcast %97 : vector<8x1xf32> to vector<8x512xf32>
    %99 = arith.subf %93, %98 : vector<8x512xf32>
    %100 = arith.mulf %99, %99 : vector<8x512xf32>
    %cst_67 = arith.constant dense<0.000000e+00> : vector<8xf32>
    %101 = vector.multi_reduction <add>, %100, %cst_67 [1] : vector<8x512xf32> to vector<8xf32>
    %102 = vector.shape_cast %101 : vector<8xf32> to vector<8x1xf32>
    %cst_68 = arith.constant 0.001953125 : f32
    %103 = vector.broadcast %cst_68 : f32 to vector<8x1xf32>
    %104 = arith.mulf %102, %103 : vector<8x1xf32>
    %c0_69 = arith.constant 0 : index
    %c0_70 = arith.constant 0 : index
    %105 = vector.load %arg8[%c0_69, %c0_70] : memref<8x1xf32, #tpu.memory_space<vmem>>, vector<8x1xf32>
    %cst_71 = arith.constant 9.99999974E-6 : f32
    %106 = vector.broadcast %cst_71 : f32 to vector<8x1xf32>
    %107 = arith.addf %104, %106 : vector<8x1xf32>
    %108 = math.rsqrt %107 : vector<8x1xf32>
    %109 = arith.mulf %105, %108 : vector<8x1xf32>
    %110 = vector.broadcast %109 : vector<8x1xf32> to vector<8x512xf32>
    %111 = arith.mulf %99, %110 : vector<8x512xf32>
    %c0_72 = arith.constant 0 : index
    %c0_73 = arith.constant 0 : index
    %112 = vector.load %arg9[%c0_72, %c0_73] : memref<8x1xf32, #tpu.memory_space<vmem>>, vector<8x1xf32>
    %113 = vector.broadcast %112 : vector<8x1xf32> to vector<8x512xf32>
    %114 = arith.addf %111, %113 : vector<8x512xf32>
    %cst_74 = arith.constant 0.000000e+00 : f32
    %115 = vector.broadcast %cst_74 : f32 to vector<8x512xf32>
    %116 = arith.maximumf %114, %115 : vector<8x512xf32>
    %c0_75 = arith.constant 0 : index
    %c17_76 = arith.constant 17 : index
    %117 = vector.load %arg14[%c0_75, %c17_76] : memref<8x546xf32, #tpu.memory_space<vmem>>, vector<8x512xf32>
    tpu.vector_store %arg14[%c0_75, %c17_76], %116 {strides = array<i32>} : memref<8x546xf32, #tpu.memory_space<vmem>>, vector<8x512xf32>,
    %c0_77 = arith.constant 0 : index
    %c0_78 = arith.constant 0 : index
    %118 = vector.load %arg14[%c0_77, %c0_78] : memref<8x546xf32, #tpu.memory_space<vmem>>, vector<8x512xf32>
    %119 = vector.broadcast %6 : vector<1x512xf32> to vector<8x512xf32>
    %120 = arith.mulf %118, %119 : vector<8x512xf32>
    %c0_79 = arith.constant 0 : index
    %c1_80 = arith.constant 1 : index
    %121 = vector.load %arg14[%c0_79, %c1_80] : memref<8x546xf32, #tpu.memory_space<vmem>>, vector<8x512xf32>
    %122 = vector.broadcast %7 : vector<1x512xf32> to vector<8x512xf32>
    %123 = arith.mulf %121, %122 : vector<8x512xf32>
    %c0_81 = arith.constant 0 : index
    %c2_82 = arith.constant 2 : index
    %124 = vector.load %arg14[%c0_81, %c2_82] : memref<8x546xf32, #tpu.memory_space<vmem>>, vector<8x512xf32>
    %125 = vector.broadcast %8 : vector<1x512xf32> to vector<8x512xf32>
    %126 = arith.mulf %124, %125 : vector<8x512xf32>
    %c0_83 = arith.constant 0 : index
    %c16_84 = arith.constant 16 : index
    %127 = vector.load %arg14[%c0_83, %c16_84] : memref<8x546xf32, #tpu.memory_space<vmem>>, vector<8x512xf32>
    %128 = vector.broadcast %9 : vector<1x512xf32> to vector<8x512xf32>
    %129 = arith.mulf %127, %128 : vector<8x512xf32>
    %c0_85 = arith.constant 0 : index
    %c17_86 = arith.constant 17 : index
    %130 = vector.load %arg14[%c0_85, %c17_86] : memref<8x546xf32, #tpu.memory_space<vmem>>, vector<8x512xf32>
    %c0_87 = arith.constant 0 : index
    %c18_88 = arith.constant 18 : index
    %131 = vector.load %arg14[%c0_87, %c18_88] : memref<8x546xf32, #tpu.memory_space<vmem>>, vector<8x512xf32>
    %132 = vector.broadcast %10 : vector<1x512xf32> to vector<8x512xf32>
    %133 = arith.mulf %131, %132 : vector<8x512xf32>
    %c0_89 = arith.constant 0 : index
    %c32_90 = arith.constant 32 : index
    %134 = vector.load %arg14[%c0_89, %c32_90] : memref<8x546xf32, #tpu.memory_space<vmem>>, vector<8x512xf32>
    %135 = vector.broadcast %11 : vector<1x512xf32> to vector<8x512xf32>
    %136 = arith.mulf %134, %135 : vector<8x512xf32>
    %c0_91 = arith.constant 0 : index
    %c33_92 = arith.constant 33 : index
    %137 = vector.load %arg14[%c0_91, %c33_92] : memref<8x546xf32, #tpu.memory_space<vmem>>, vector<8x512xf32>
    %138 = vector.broadcast %12 : vector<1x512xf32> to vector<8x512xf32>
    %139 = arith.mulf %137, %138 : vector<8x512xf32>
    %c0_93 = arith.constant 0 : index
    %c34_94 = arith.constant 34 : index
    %140 = vector.load %arg14[%c0_93, %c34_94] : memref<8x546xf32, #tpu.memory_space<vmem>>, vector<8x512xf32>
    %141 = vector.broadcast %13 : vector<1x512xf32> to vector<8x512xf32>
    %142 = arith.mulf %140, %141 : vector<8x512xf32>
    %143 = tpu.concatenate %120, %123, %126, %129, %130, %133, %136, %139, %142 in 0 : vector<8x512xf32>, vector<8x512xf32>, vector<8x512xf32>, vector<8x512xf32>, vector<8x512xf32>, vector<8x512xf32>, vector<8x512xf32>, vector<8x512xf32>, vector<8x512xf32> -> vector<72x512xf32>
    %c0_95 = arith.constant 0 : index
    %c0_96 = arith.constant 0 : index
    %144 = vector.load %arg10[%c0_95, %c0_96] : memref<8x72xf32, #tpu.memory_space<vmem>>, vector<8x72xf32>
    %cst_97 = arith.constant dense<0.000000e+00> : vector<8x512xf32>
    %145 = tpu.matmul %144, %143, %cst_97 {dimension_numbers = #tpu.dot_dimension_numbers<[1], [0], [0], [1], [0, 0, 1, 1], [], []>} : vector<8x72xf32>, vector<72x512xf32>, vector<8x512xf32> -> vector<8x512xf32>
    %cst_98 = arith.constant dense<0.000000e+00> : vector<8xf32>
    %146 = vector.multi_reduction <add>, %145, %cst_98 [1] : vector<8x512xf32> to vector<8xf32>
    %147 = vector.shape_cast %146 : vector<8xf32> to vector<8x1xf32>
    %cst_99 = arith.constant 0.001953125 : f32
    %148 = vector.broadcast %cst_99 : f32 to vector<8x1xf32>
    %149 = arith.mulf %147, %148 : vector<8x1xf32>
    %150 = vector.broadcast %149 : vector<8x1xf32> to vector<8x512xf32>
    %151 = arith.subf %145, %150 : vector<8x512xf32>
    %152 = arith.mulf %151, %151 : vector<8x512xf32>
    %cst_100 = arith.constant dense<0.000000e+00> : vector<8xf32>
    %153 = vector.multi_reduction <add>, %152, %cst_100 [1] : vector<8x512xf32> to vector<8xf32>
    %154 = vector.shape_cast %153 : vector<8xf32> to vector<8x1xf32>
    %cst_101 = arith.constant 0.001953125 : f32
    %155 = vector.broadcast %cst_101 : f32 to vector<8x1xf32>
    %156 = arith.mulf %154, %155 : vector<8x1xf32>
    %c0_102 = arith.constant 0 : index
    %c0_103 = arith.constant 0 : index
    %157 = vector.load %arg11[%c0_102, %c0_103] : memref<8x1xf32, #tpu.memory_space<vmem>>, vector<8x1xf32>
    %cst_104 = arith.constant 9.99999974E-6 : f32
    %158 = vector.broadcast %cst_104 : f32 to vector<8x1xf32>
    %159 = arith.addf %156, %158 : vector<8x1xf32>
    %160 = math.rsqrt %159 : vector<8x1xf32>
    %161 = arith.mulf %157, %160 : vector<8x1xf32>
    %162 = vector.broadcast %161 : vector<8x1xf32> to vector<8x512xf32>
    %163 = arith.mulf %151, %162 : vector<8x512xf32>
    %c0_105 = arith.constant 0 : index
    %c0_106 = arith.constant 0 : index
    %164 = vector.load %arg12[%c0_105, %c0_106] : memref<8x1xf32, #tpu.memory_space<vmem>>, vector<8x1xf32>
    %165 = vector.broadcast %164 : vector<8x1xf32> to vector<8x512xf32>
    %166 = arith.addf %163, %165 : vector<8x512xf32>
    %cst_107 = arith.constant 0.000000e+00 : f32
    %167 = vector.broadcast %cst_107 : f32 to vector<8x512xf32>
    %168 = arith.maximumf %166, %167 : vector<8x512xf32>
    %c0_108 = arith.constant 0 : index
    %c0_109 = arith.constant 0 : index
    %169 = vector.load %arg13[%c0_108, %c0_109] : memref<8x512xf32, #tpu.memory_space<vmem>>, vector<8x512xf32>
    tpu.vector_store %arg13[%c0_108, %c0_109], %168 {strides = array<i32>} : memref<8x512xf32, #tpu.memory_space<vmem>>, vector<8x512xf32>,
    return
  }
  func.func @transform_0(%arg0: i32) -> (i32, i32) {
    %c0_i32 = arith.constant 0 : i32
    %c0_i32_0 = arith.constant 0 : i32
    %c0_i32_1 = arith.constant 0 : i32
    return %c0_i32, %c0_i32_0 : i32, i32
  }
  func.func @transform_1(%arg0: i32) -> (i32, i32) {
    %c0_i32 = arith.constant 0 : i32
    %c0_i32_0 = arith.constant 0 : i32
    %c0_i32_1 = arith.constant 0 : i32
    return %c0_i32, %c0_i32_0 : i32, i32
  }
  func.func @transform_2(%arg0: i32) -> (i32, i32) {
    %c0_i32 = arith.constant 0 : i32
    %c0_i32_0 = arith.constant 0 : i32
    %c0_i32_1 = arith.constant 0 : i32
    return %c0_i32, %c0_i32_0 : i32, i32
  }
  func.func @transform_3(%arg0: i32) -> (i32, i32) {
    %c0_i32 = arith.constant 0 : i32
    %c0_i32_0 = arith.constant 0 : i32
    %c0_i32_1 = arith.constant 0 : i32
    return %c0_i32, %c0_i32_0 : i32, i32
  }
  func.func @transform_4(%arg0: i32) -> (i32, i32) {
    %c0_i32 = arith.constant 0 : i32
    %c0_i32_0 = arith.constant 0 : i32
    %c0_i32_1 = arith.constant 0 : i32
    return %c0_i32, %c0_i32_0 : i32, i32
  }
  func.func @transform_5(%arg0: i32) -> (i32, i32) {
    %c0_i32 = arith.constant 0 : i32
    %c0_i32_0 = arith.constant 0 : i32
    %c0_i32_1 = arith.constant 0 : i32
    return %c0_i32, %c0_i32_0 : i32, i32
  }
  func.func @transform_6(%arg0: i32) -> (i32, i32) {
    %c0_i32 = arith.constant 0 : i32
    %c0_i32_0 = arith.constant 0 : i32
    %c0_i32_1 = arith.constant 0 : i32
    return %c0_i32, %c0_i32_0 : i32, i32
  }
  func.func @transform_7(%arg0: i32) -> (i32, i32) {
    %c0_i32 = arith.constant 0 : i32
    %c0_i32_0 = arith.constant 0 : i32
    %c0_i32_1 = arith.constant 0 : i32
    return %c0_i32, %c0_i32_0 : i32, i32
  }
  func.func @transform_8(%arg0: i32) -> (i32, i32) {
    %c0_i32 = arith.constant 0 : i32
    %c0_i32_0 = arith.constant 0 : i32
    %c0_i32_1 = arith.constant 0 : i32
    return %c0_i32, %c0_i32_0 : i32, i32
  }
  func.func @transform_9(%arg0: i32) -> (i32, i32) {
    %c0_i32 = arith.constant 0 : i32
    %c0_i32_0 = arith.constant 0 : i32
    %c0_i32_1 = arith.constant 0 : i32
    return %c0_i32, %c0_i32_0 : i32, i32
  }
  func.func @transform_10(%arg0: i32) -> (i32, i32) {
    %c0_i32 = arith.constant 0 : i32
    %c0_i32_0 = arith.constant 0 : i32
    %c0_i32_1 = arith.constant 0 : i32
    return %c0_i32, %c0_i32_0 : i32, i32
  }
  func.func @transform_11(%arg0: i32) -> (i32, i32) {
    %c0_i32 = arith.constant 0 : i32
    %c0_i32_0 = arith.constant 0 : i32
    %c0_i32_1 = arith.constant 0 : i32
    return %c0_i32, %c0_i32_0 : i32, i32
  }
  func.func @transform_12(%arg0: i32) -> (i32, i32) {
    %c0_i32 = arith.constant 0 : i32
    %c0_i32_0 = arith.constant 0 : i32
    %c0_i32_1 = arith.constant 0 : i32
    return %c0_i32, %c0_i32_0 : i32, i32
  }
}

</mosaic_0001>

<llo_original>
// kernel: tile.7
$region0: #{tile.7}
  %s0 = inlined_call_operand.vmem [shape: f32[9,2,1,1,16,1,16], index: 0, kind: input, shape index: {}]
  %s1 = inlined_call_operand.vmem [shape: f32[9,512], index: 1, kind: output, shape index: {}]
  %v2 = vld [vmem:[%s0] ss:$8 sm:$0xf]
  %v3 = vld [vmem:[%s0] ss:$8 sm:$0xf0]
  %vm4 = vcmask 1047556
  %v5 = vsel %vm4, %v3, %v2
  %vm6 = vcmask 130048
  %7 = vst.msk [vmem:[%s1] ss:$8 sm:$0xf] %vm6, %v5
  %s8 = scalar_lea.vmem %s1, 4294967265
  %9 = vst.msk [vmem:[%s8] ss:$8 sm:$0xf0] %vm6, %v5
  %s10 = scalar_lea.vmem %s0, 64
  %v11 = vld [vmem:[%s10] ss:$8 sm:$0xf]
  %s12 = scalar_lea.vmem %s0, 64
  %v13 = vld [vmem:[%s12] ss:$8 sm:$0xf0]
  %vm14 = vcmask 1047556
  %v15 = vsel %vm14, %v13, %v11
  %vm16 = vcmask 130048
  %s17 = scalar_lea.vmem %s1, 2
  %18 = vst.msk [vmem:[%s17] ss:$8 sm:$0xf] %vm16, %v15
  %s19 = scalar_lea.vmem %s1, 4294967267
  %20 = vst.msk [vmem:[%s19] ss:$8 sm:$0xf0] %vm16, %v15
  %s21 = scalar_lea.vmem %s0, 128
  %v22 = vld [vmem:[%s21] ss:$8 sm:$0xf]
  %s23 = scalar_lea.vmem %s0, 128
  %v24 = vld [vmem:[%s23] ss:$8 sm:$0xf0]
  %vm25 = vcmask 1047556
  %v26 = vsel %vm25, %v24, %v22
  %vm27 = vcmask 130048
  %s28 = scalar_lea.vmem %s1, 4
  %29 = vst.msk [vmem:[%s28] ss:$8 sm:$0xf] %vm27, %v26
  %s30 = scalar_lea.vmem %s1, 4294967269
  %31 = vst.msk [vmem:[%s30] ss:$8 sm:$0xf0] %vm27, %v26
  %s32 = scalar_lea.vmem %s0, 192
  %v33 = vld [vmem:[%s32] ss:$8 sm:$0xf]
  %s34 = scalar_lea.vmem %s0, 192
  %v35 = vld [vmem:[%s34] ss:$8 sm:$0xf0]
  %vm36 = vcmask 1047556
  %v37 = vsel %vm36, %v35, %v33
  %vm38 = vcmask 130048
  %s39 = scalar_lea.vmem %s1, 6
  %40 = vst.msk [vmem:[%s39] ss:$8 sm:$0xf] %vm38, %v37
  %s41 = scalar_lea.vmem %s1, 4294967271
  %42 = vst.msk [vmem:[%s41] ss:$8 sm:$0xf0] %vm38, %v37
  %s43 = scalar_lea.vmem %s0, 256
  %v44 = vld [vmem:[%s43] ss:$8 sm:$0xf]
  %vm45 = vcmask 130048
  %s46 = scalar_lea.vmem %s1, 32
  %47 = vst.msk [vmem:[%s46] ss:$8 sm:$0xf] %vm45, %v44
  %s48 = scalar_lea.vmem %s0, 7
  %v49 = vld [vmem:[%s48] sm:$0x1]
  %s50 = scalar_lea.vmem %s0, 38
  %v51 = vld [vmem:[%s50] sm:$0x2]
  %vm52 = vcmask 1041409
  %v53 = vsel %vm52, %v51, %v49
  %s54 = scalar_lea.vmem %s0, 69
  %v55 = vld [vmem:[%s54] sm:$0x4]
  %vm56 = vcmask 1042434
  %v57 = vsel %vm56, %v55, %v53
  %s58 = scalar_lea.vmem %s0, 100
  %v59 = vld [vmem:[%s58] sm:$0x8]
  %vm60 = vcmask 1043459
  %v61 = vsel %vm60, %v59, %v57
  %s62 = scalar_lea.vmem %s0, 131
  %v63 = vld [vmem:[%s62] sm:$0x10]
  %vm64 = vcmask 1044484
  %v65 = vsel %vm64, %v63, %v61
  %s66 = scalar_lea.vmem %s0, 162
  %v67 = vld [vmem:[%s66] sm:$0x20]
  %vm68 = vcmask 1045509
  %v69 = vsel %vm68, %v67, %v65
  %s70 = scalar_lea.vmem %s0, 193
  %v71 = vld [vmem:[%s70] sm:$0x40]
  %vm72 = vcmask 1046534
  %v73 = vsel %vm72, %v71, %v69
  %s74 = scalar_lea.vmem %s0, 224
  %v75 = vld [vmem:[%s74] sm:$0x80]
  %vm76 = vcmask 1047559
  %v77 = vsel %vm76, %v75, %v73
  %78 = vrot.lane.b32.xlu0 %v77, 112
  %v79 = vpop.permute.xlu0 %78
  %vm80 = vcmask 1048448
  %81 = vst.msk [vmem:[%s1] sm:$0xff] %vm80, %v79
  %s82 = scalar_lea.vmem %s0, 263
  %s83 = smov 3
  %v84 = vld [vmem:[%s82] ss:$-248 sm:%s83]
  %s85 = scalar_lea.vmem %s0, 45
  %v86 = vld [vmem:[%s85] sm:$0x4]
  %vm87 = vcmask 1042434
  %v88 = vsel %vm87, %v86, %v84
  %s89 = scalar_lea.vmem %s0, 76
  %v90 = vld [vmem:[%s89] sm:$0x8]
  %vm91 = vcmask 1043459
  %v92 = vsel %vm91, %v90, %v88
  %s93 = scalar_lea.vmem %s0, 107
  %v94 = vld [vmem:[%s93] sm:$0x10]
  %vm95 = vcmask 1044484
  %v96 = vsel %vm95, %v94, %v92
  %s97 = scalar_lea.vmem %s0, 138
  %v98 = vld [vmem:[%s97] sm:$0x20]
  %vm99 = vcmask 1045509
  %v100 = vsel %vm99, %v98, %v96
  %s101 = scalar_lea.vmem %s0, 169
  %v102 = vld [vmem:[%s101] sm:$0x40]
  %vm103 = vcmask 1046534
  %v104 = vsel %vm103, %v102, %v100
  %s105 = scalar_lea.vmem %s0, 200
  %v106 = vld [vmem:[%s105] sm:$0x80]
  %vm107 = vcmask 1047559
  %v108 = vsel %vm107, %v106, %v104
  %109 = vrot.lane.b32.xlu0 %v108, 112
  %v110 = vpop.permute.xlu0 %109
  %vm111 = vcmask 1048448
  %s112 = scalar_lea.vmem %s1, 32
  %113 = vst.msk [vmem:[%s112] ss:$-24 sm:$0x3] %vm111, %v110
  %s114 = scalar_lea.vmem %s1, 7
  %115 = vst.msk [vmem:[%s114] sm:$0xfc] %vm111, %v110
  %s116 = scalar_lea.vmem %s0, 271
  %v117 = vld [vmem:[%s116] sm:$0x1]
  %s118 = scalar_lea.vmem %s0, 455
  %s119 = smov 6
  %v120 = vld [vmem:[%s118] ss:$-216 sm:%s119]
  %vm121 = vcmask 1042433
  %v122 = vsel %vm121, %v120, %v117
  %s123 = scalar_lea.vmem %s0, 52
  %v124 = vld [vmem:[%s123] sm:$0x8]
  %vm125 = vcmask 1043459
  %v126 = vsel %vm125, %v124, %v122
  %s127 = scalar_lea.vmem %s0, 83
  %v128 = vld [vmem:[%s127] sm:$0x10]
  %vm129 = vcmask 1044484
  %v130 = vsel %vm129, %v128, %v126
  %s131 = scalar_lea.vmem %s0, 114
  %v132 = vld [vmem:[%s131] sm:$0x20]
  %vm133 = vcmask 1045509
  %v134 = vsel %vm133, %v132, %v130
  %s135 = scalar_lea.vmem %s0, 145
  %v136 = vld [vmem:[%s135] sm:$0x40]
  %vm137 = vcmask 1046534
  %v138 = vsel %vm137, %v136, %v134
  %s139 = scalar_lea.vmem %s0, 176
  %v140 = vld [vmem:[%s139] sm:$0x80]
  %vm141 = vcmask 1047559
  %v142 = vsel %vm141, %v140, %v138
  %143 = vrot.lane.b32.xlu0 %v142, 112
  %v144 = vpop.permute.xlu0 %143
  %vm145 = vcmask 1048448
  %s146 = scalar_lea.vmem %s1, 40
  %147 = vst.msk [vmem:[%s146] ss:$-25 sm:$0x3] %vm145, %v144
  %s148 = scalar_lea.vmem %s1, 14
  %149 = vst.msk [vmem:[%s148] sm:$0xfc] %vm145, %v144
  %s150 = scalar_lea.vmem %s0, 279
  %v151 = vld [vmem:[%s150] sm:$0x1]
  %s152 = scalar_lea.vmem %s0, 214
  %v153 = vld [vmem:[%s152] sm:$0x2]
  %vm154 = vcmask 1041409
  %v155 = vsel %vm154, %v153, %v151
  %s156 = scalar_lea.vmem %s0, 679
  %s157 = smov 12
  %v158 = vld [vmem:[%s156] ss:$-216 sm:%s157]
  %vm159 = vcmask 1043458
  %v160 = vsel %vm159, %v158, %v155
  %s161 = scalar_lea.vmem %s0, 59
  %v162 = vld [vmem:[%s161] sm:$0x10]
  %vm163 = vcmask 1044484
  %v164 = vsel %vm163, %v162, %v160
  %s165 = scalar_lea.vmem %s0, 90
  %v166 = vld [vmem:[%s165] sm:$0x20]
  %vm167 = vcmask 1045509
  %v168 = vsel %vm167, %v166, %v164
  %s169 = scalar_lea.vmem %s0, 121
  %v170 = vld [vmem:[%s169] sm:$0x40]
  %vm171 = vcmask 1046534
  %v172 = vsel %vm171, %v170, %v168
  %s173 = scalar_lea.vmem %s0, 152
  %v174 = vld [vmem:[%s173] sm:$0x80]
  %vm175 = vcmask 1047559
  %v176 = vsel %vm175, %v174, %v172
  %177 = vrot.lane.b32.xlu0 %v176, 112
  %v178 = vpop.permute.xlu0 %177
  %vm179 = vcmask 1048448
  %s180 = scalar_lea.vmem %s1, 48
  %181 = vst.msk [vmem:[%s180] ss:$-26 sm:$0x3] %vm179, %v178
  %s182 = scalar_lea.vmem %s1, 21
  %183 = vst.msk [vmem:[%s182] sm:$0xfc] %vm179, %v178
  %s184 = scalar_lea.vmem %s0, 287
  %v185 = vld [vmem:[%s184] sm:$0x1]
  %s186 = scalar_lea.vmem %s0, 190
  %v187 = vld [vmem:[%s186] sm:$0x2]
  %vm188 = vcmask 1041409
  %v189 = vsel %vm188, %v187, %v185
  %s190 = scalar_lea.vmem %s0, 221
  %v191 = vld [vmem:[%s190] sm:$0x4]
  %vm192 = vcmask 1042434
  %v193 = vsel %vm192, %v191, %v189
  %s194 = scalar_lea.vmem %s0, 252
  %v195 = vld [vmem:[%s194] sm:$0x8]
  %vm196 = vcmask 1043459
  %v197 = vsel %vm196, %v195, %v193
  %198 = vrot.lane.b32.xlu0 %v197, 112
  %v199 = vpop.permute.xlu0 %198
  %vm200 = vcmask 1048448
  %s201 = scalar_lea.vmem %s1, 56
  %202 = vst.msk [vmem:[%s201] ss:$-27 sm:$0x3] %vm200, %v199
  %s203 = scalar_lea.vmem %s1, 28
  %204 = vst.msk [vmem:[%s203] sm:$0xc] %vm200, %v199
  %s205 = scalar_lea.vmem %s0, 6
  %v206 = vld [vmem:[%s205] sm:$0x1]
  %s207 = scalar_lea.vmem %s0, 37
  %v208 = vld [vmem:[%s207] sm:$0x2]
  %vm209 = vcmask 1041409
  %v210 = vsel %vm209, %v208, %v206
  %s211 = scalar_lea.vmem %s0, 68
  %v212 = vld [vmem:[%s211] sm:$0x4]
  %vm213 = vcmask 1042434
  %v214 = vsel %vm213, %v212, %v210
  %s215 = scalar_lea.vmem %s0, 99
  %v216 = vld [vmem:[%s215] sm:$0x8]
  %vm217 = vcmask 1043459
  %v218 = vsel %vm217, %v216, %v214
  %s219 = scalar_lea.vmem %s0, 130
  %v220 = vld [vmem:[%s219] sm:$0x10]
  %vm221 = vcmask 1044484
  %v222 = vsel %vm221, %v220, %v218
  %s223 = scalar_lea.vmem %s0, 161
  %v224 = vld [vmem:[%s223] sm:$0x20]
  %vm225 = vcmask 1045509
  %v226 = vsel %vm225, %v224, %v222
  %s227 = scalar_lea.vmem %s0, 192
  %v228 = vld [vmem:[%s227] sm:$0x40]
  %vm229 = vcmask 1046534
  %v230 = vsel %vm229, %v228, %v226
  %s231 = scalar_lea.vmem %s0, 223
  %v232 = vld [vmem:[%s231] sm:$0x80]
  %vm233 = vcmask 1047559
  %v234 = vsel %vm233, %v232, %v230
  %235 = vrot.lane.b32.xlu0 %v234, 96
  %v236 = vpop.permute.xlu0 %235
  %vm237 = vcmask 917248
  %238 = vst.msk [vmem:[%s1] sm:$0xff] %vm237, %v236
  %s239 = scalar_lea.vmem %s0, 262
  %s240 = smov 3
  %v241 = vld [vmem:[%s239] ss:$-248 sm:%s240]
  %s242 = scalar_lea.vmem %s0, 44
  %v243 = vld [vmem:[%s242] sm:$0x4]
  %vm244 = vcmask 1042434
  %v245 = vsel %vm244, %v243, %v241
  %s246 = scalar_lea.vmem %s0, 75
  %v247 = vld [vmem:[%s246] sm:$0x8]
  %vm248 = vcmask 1043459
  %v249 = vsel %vm248, %v247, %v245
  %s250 = scalar_lea.vmem %s0, 106
  %v251 = vld [vmem:[%s250] sm:$0x10]
  %vm252 = vcmask 1044484
  %v253 = vsel %vm252, %v251, %v249
  %s254 = scalar_lea.vmem %s0, 137
  %v255 = vld [vmem:[%s254] sm:$0x20]
  %vm256 = vcmask 1045509
  %v257 = vsel %vm256, %v255, %v253
  %s258 = scalar_lea.vmem %s0, 168
  %v259 = vld [vmem:[%s258] sm:$0x40]
  %vm260 = vcmask 1046534
  %v261 = vsel %vm260, %v259, %v257
  %s262 = scalar_lea.vmem %s0, 199
  %v263 = vld [vmem:[%s262] sm:$0x80]
  %vm264 = vcmask 1047559
  %v265 = vsel %vm264, %v263, %v261
  %266 = vrot.lane.b32.xlu0 %v265, 96
  %v267 = vpop.permute.xlu0 %266
  %vm268 = vcmask 917248
  %s269 = scalar_lea.vmem %s1, 32
  %270 = vst.msk [vmem:[%s269] ss:$-24 sm:$0x3] %vm268, %v267
  %s271 = scalar_lea.vmem %s1, 7
  %272 = vst.msk [vmem:[%s271] sm:$0xfc] %vm268, %v267
  %s273 = scalar_lea.vmem %s0, 270
  %v274 = vld [vmem:[%s273] sm:$0x1]
  %s275 = scalar_lea.vmem %s0, 454
  %s276 = smov 6
  %v277 = vld [vmem:[%s275] ss:$-216 sm:%s276]
  %vm278 = vcmask 1042433
  %v279 = vsel %vm278, %v277, %v274
  %s280 = scalar_lea.vmem %s0, 51
  %v281 = vld [vmem:[%s280] sm:$0x8]
  %vm282 = vcmask 1043459
  %v283 = vsel %vm282, %v281, %v279
  %s284 = scalar_lea.vmem %s0, 82
  %v285 = vld [vmem:[%s284] sm:$0x10]
  %vm286 = vcmask 1044484
  %v287 = vsel %vm286, %v285, %v283
  %s288 = scalar_lea.vmem %s0, 113
  %v289 = vld [vmem:[%s288] sm:$0x20]
  %vm290 = vcmask 1045509
  %v291 = vsel %vm290, %v289, %v287
  %s292 = scalar_lea.vmem %s0, 144
  %v293 = vld [vmem:[%s292] sm:$0x40]
  %vm294 = vcmask 1046534
  %v295 = vsel %vm294, %v293, %v291
  %s296 = scalar_lea.vmem %s0, 175
  %v297 = vld [vmem:[%s296] sm:$0x80]
  %vm298 = vcmask 1047559
  %v299 = vsel %vm298, %v297, %v295
  %300 = vrot.lane.b32.xlu0 %v299, 96
  %v301 = vpop.permute.xlu0 %300
  %vm302 = vcmask 917248
  %s303 = scalar_lea.vmem %s1, 40
  %304 = vst.msk [vmem:[%s303] ss:$-25 sm:$0x3] %vm302, %v301
  %s305 = scalar_lea.vmem %s1, 14
  %306 = vst.msk [vmem:[%s305] sm:$0xfc] %vm302, %v301
  %s307 = scalar_lea.vmem %s0, 278
  %v308 = vld [vmem:[%s307] sm:$0x1]
  %s309 = scalar_lea.vmem %s0, 213
  %v310 = vld [vmem:[%s309] sm:$0x2]
  %vm311 = vcmask 1041409
  %v312 = vsel %vm311, %v310, %v308
  %s313 = scalar_lea.vmem %s0, 678
  %s314 = smov 12
  %v315 = vld [vmem:[%s313] ss:$-216 sm:%s314]
  %vm316 = vcmask 1043458
  %v317 = vsel %vm316, %v315, %v312
  %s318 = scalar_lea.vmem %s0, 58
  %v319 = vld [vmem:[%s318] sm:$0x10]
  %vm320 = vcmask 1044484
  %v321 = vsel %vm320, %v319, %v317
  %s322 = scalar_lea.vmem %s0, 89
  %v323 = vld [vmem:[%s322] sm:$0x20]
  %vm324 = vcmask 1045509
  %v325 = vsel %vm324, %v323, %v321
  %s326 = scalar_lea.vmem %s0, 120
  %v327 = vld [vmem:[%s326] sm:$0x40]
  %vm328 = vcmask 1046534
  %v329 = vsel %vm328, %v327, %v325
  %s330 = scalar_lea.vmem %s0, 151
  %v331 = vld [vmem:[%s330] sm:$0x80]
  %vm332 = vcmask 1047559
  %v333 = vsel %vm332, %v331, %v329
  %334 = vrot.lane.b32.xlu0 %v333, 96
  %v335 = vpop.permute.xlu0 %334
  %vm336 = vcmask 917248
  %s337 = scalar_lea.vmem %s1, 48
  %338 = vst.msk [vmem:[%s337] ss:$-26 sm:$0x3] %vm336, %v335
  %s339 = scalar_lea.vmem %s1, 21
  %340 = vst.msk [vmem:[%s339] sm:$0xfc] %vm336, %v335
  %s341 = scalar_lea.vmem %s0, 286
  %v342 = vld [vmem:[%s341] sm:$0x1]
  %s343 = scalar_lea.vmem %s0, 189
  %v344 = vld [vmem:[%s343] sm:$0x2]
  %vm345 = vcmask 1041409
  %v346 = vsel %vm345, %v344, %v342
  %s347 = scalar_lea.vmem %s0, 220
  %v348 = vld [vmem:[%s347] sm:$0x4]
  %vm349 = vcmask 1042434
  %v350 = vsel %vm349, %v348, %v346
  %s351 = scalar_lea.vmem %s0, 251
  %v352 = vld [vmem:[%s351] sm:$0x8]
  %vm353 = vcmask 1043459
  %v354 = vsel %vm353, %v352, %v350
  %355 = vrot.lane.b32.xlu0 %v354, 96
  %v356 = vpop.permute.xlu0 %355
  %vm357 = vcmask 917248
  %s358 = scalar_lea.vmem %s1, 56
  %359 = vst.msk [vmem:[%s358] ss:$-27 sm:$0x3] %vm357, %v356
  %s360 = scalar_lea.vmem %s1, 28
  %361 = vst.msk [vmem:[%s360] sm:$0xc] %vm357, %v356
  %s362 = scalar_lea.vmem %s0, 5
  %v363 = vld [vmem:[%s362] sm:$0x1]
  %s364 = scalar_lea.vmem %s0, 36
  %v365 = vld [vmem:[%s364] sm:$0x2]
  %vm366 = vcmask 1041409
  %v367 = vsel %vm366, %v365, %v363
  %s368 = scalar_lea.vmem %s0, 67
  %v369 = vld [vmem:[%s368] sm:$0x4]
  %vm370 = vcmask 1042434
  %v371 = vsel %vm370, %v369, %v367
  %s372 = scalar_lea.vmem %s0, 98
  %v373 = vld [vmem:[%s372] sm:$0x8]
  %vm374 = vcmask 1043459
  %v375 = vsel %vm374, %v373, %v371
  %s376 = scalar_lea.vmem %s0, 129
  %v377 = vld [vmem:[%s376] sm:$0x10]
  %vm378 = vcmask 1044484
  %v379 = vsel %vm378, %v377, %v375
  %s380 = scalar_lea.vmem %s0, 160
  %v381 = vld [vmem:[%s380] sm:$0x20]
  %vm382 = vcmask 1045509
  %v383 = vsel %vm382, %v381, %v379
  %s384 = scalar_lea.vmem %s0, 191
  %v385 = vld [vmem:[%s384] sm:$0x40]
  %vm386 = vcmask 1046534
  %v387 = vsel %vm386, %v385, %v383
  %s388 = scalar_lea.vmem %s0, 222
  %v389 = vld [vmem:[%s388] sm:$0x80]
  %vm390 = vcmask 1047559
  %v391 = vsel %vm390, %v389, %v387
  %392 = vrot.lane.b32.xlu0 %v391, 80
  %v393 = vpop.permute.xlu0 %392
  %vm394 = vcmask 786048
  %395 = vst.msk [vmem:[%s1] sm:$0xff] %vm394, %v393
  %s396 = scalar_lea.vmem %s0, 261
  %s397 = smov 3
  %v398 = vld [vmem:[%s396] ss:$-248 sm:%s397]
  %s399 = scalar_lea.vmem %s0, 43
  %v400 = vld [vmem:[%s399] sm:$0x4]
  %vm401 = vcmask 1042434
  %v402 = vsel %vm401, %v400, %v398
  %s403 = scalar_lea.vmem %s0, 74
  %v404 = vld [vmem:[%s403] sm:$0x8]
  %vm405 = vcmask 1043459
  %v406 = vsel %vm405, %v404, %v402
  %s407 = scalar_lea.vmem %s0, 105
  %v408 = vld [vmem:[%s407] sm:$0x10]
  %vm409 = vcmask 1044484
  %v410 = vsel %vm409, %v408, %v406
  %s411 = scalar_lea.vmem %s0, 136
  %v412 = vld [vmem:[%s411] sm:$0x20]
  %vm413 = vcmask 1045509
  %v414 = vsel %vm413, %v412, %v410
  %s415 = scalar_lea.vmem %s0, 167
  %v416 = vld [vmem:[%s415] sm:$0x40]
  %vm417 = vcmask 1046534
  %v418 = vsel %vm417, %v416, %v414
  %s419 = scalar_lea.vmem %s0, 198
  %v420 = vld [vmem:[%s419] sm:$0x80]
  %vm421 = vcmask 1047559
  %v422 = vsel %vm421, %v420, %v418
  %423 = vrot.lane.b32.xlu0 %v422, 80
  %v424 = vpop.permute.xlu0 %423
  %vm425 = vcmask 786048
  %s426 = scalar_lea.vmem %s1, 32
  %427 = vst.msk [vmem:[%s426] ss:$-24 sm:$0x3] %vm425, %v424
  %s428 = scalar_lea.vmem %s1, 7
  %429 = vst.msk [vmem:[%s428] sm:$0xfc] %vm425, %v424
  %s430 = scalar_lea.vmem %s0, 269
  %v431 = vld [vmem:[%s430] sm:$0x1]
  %s432 = scalar_lea.vmem %s0, 453
  %s433 = smov 6
  %v434 = vld [vmem:[%s432] ss:$-216 sm:%s433]
  %vm435 = vcmask 1042433
  %v436 = vsel %vm435, %v434, %v431
  %s437 = scalar_lea.vmem %s0, 50
  %v438 = vld [vmem:[%s437] sm:$0x8]
  %vm439 = vcmask 1043459
  %v440 = vsel %vm439, %v438, %v436
  %s441 = scalar_lea.vmem %s0, 81
  %v442 = vld [vmem:[%s441] sm:$0x10]
  %vm443 = vcmask 1044484
  %v444 = vsel %vm443, %v442, %v440
  %s445 = scalar_lea.vmem %s0, 112
  %v446 = vld [vmem:[%s445] sm:$0x20]
  %vm447 = vcmask 1045509
  %v448 = vsel %vm447, %v446, %v444
  %s449 = scalar_lea.vmem %s0, 143
  %v450 = vld [vmem:[%s449] sm:$0x40]
  %vm451 = vcmask 1046534
  %v452 = vsel %vm451, %v450, %v448
  %s453 = scalar_lea.vmem %s0, 174
  %v454 = vld [vmem:[%s453] sm:$0x80]
  %vm455 = vcmask 1047559
  %v456 = vsel %vm455, %v454, %v452
  %457 = vrot.lane.b32.xlu0 %v456, 80
  %v458 = vpop.permute.xlu0 %457
  %vm459 = vcmask 786048
  %s460 = scalar_lea.vmem %s1, 40
  %461 = vst.msk [vmem:[%s460] ss:$-25 sm:$0x3] %vm459, %v458
  %s462 = scalar_lea.vmem %s1, 14
  %463 = vst.msk [vmem:[%s462] sm:$0xfc] %vm459, %v458
  %s464 = scalar_lea.vmem %s0, 277
  %v465 = vld [vmem:[%s464] sm:$0x1]
  %s466 = scalar_lea.vmem %s0, 212
  %v467 = vld [vmem:[%s466] sm:$0x2]
  %vm468 = vcmask 1041409
  %v469 = vsel %vm468, %v467, %v465
  %s470 = scalar_lea.vmem %s0, 677
  %s471 = smov 12
  %v472 = vld [vmem:[%s470] ss:$-216 sm:%s471]
  %vm473 = vcmask 1043458
  %v474 = vsel %vm473, %v472, %v469
  %s475 = scalar_lea.vmem %s0, 57
  %v476 = vld [vmem:[%s475] sm:$0x10]
  %vm477 = vcmask 1044484
  %v478 = vsel %vm477, %v476, %v474
  %s479 = scalar_lea.vmem %s0, 88
  %v480 = vld [vmem:[%s479] sm:$0x20]
  %vm481 = vcmask 1045509
  %v482 = vsel %vm481, %v480, %v478
  %s483 = scalar_lea.vmem %s0, 119
  %v484 = vld [vmem:[%s483] sm:$0x40]
  %vm485 = vcmask 1046534
  %v486 = vsel %vm485, %v484, %v482
  %s487 = scalar_lea.vmem %s0, 150
  %v488 = vld [vmem:[%s487] sm:$0x80]
  %vm489 = vcmask 1047559
  %v490 = vsel %vm489, %v488, %v486
  %491 = vrot.lane.b32.xlu0 %v490, 80
  %v492 = vpop.permute.xlu0 %491
  %vm493 = vcmask 786048
  %s494 = scalar_lea.vmem %s1, 48
  %495 = vst.msk [vmem:[%s494] ss:$-26 sm:$0x3] %vm493, %v492
  %s496 = scalar_lea.vmem %s1, 21
  %497 = vst.msk [vmem:[%s496] sm:$0xfc] %vm493, %v492
  %s498 = scalar_lea.vmem %s0, 285
  %v499 = vld [vmem:[%s498] sm:$0x1]
  %s500 = scalar_lea.vmem %s0, 188
  %v501 = vld [vmem:[%s500] sm:$0x2]
  %vm502 = vcmask 1041409
  %v503 = vsel %vm502, %v501, %v499
  %s504 = scalar_lea.vmem %s0, 219
  %v505 = vld [vmem:[%s504] sm:$0x4]
  %vm506 = vcmask 1042434
  %v507 = vsel %vm506, %v505, %v503
  %s508 = scalar_lea.vmem %s0, 250
  %v509 = vld [vmem:[%s508] sm:$0x8]
  %vm510 = vcmask 1043459
  %v511 = vsel %vm510, %v509, %v507
  %512 = vrot.lane.b32.xlu0 %v511, 80
  %v513 = vpop.permute.xlu0 %512
  %vm514 = vcmask 786048
  %s515 = scalar_lea.vmem %s1, 56
  %516 = vst.msk [vmem:[%s515] ss:$-27 sm:$0x3] %vm514, %v513
  %s517 = scalar_lea.vmem %s1, 28
  %518 = vst.msk [vmem:[%s517] sm:$0xc] %vm514, %v513
  %s519 = scalar_lea.vmem %s0, 4
  %v520 = vld [vmem:[%s519] sm:$0x1]
  %s521 = scalar_lea.vmem %s0, 35
  %v522 = vld [vmem:[%s521] sm:$0x2]
  %vm523 = vcmask 1041409
  %v524 = vsel %vm523, %v522, %v520
  %s525 = scalar_lea.vmem %s0, 66
  %v526 = vld [vmem:[%s525] sm:$0x4]
  %vm527 = vcmask 1042434
  %v528 = vsel %vm527, %v526, %v524
  %s529 = scalar_lea.vmem %s0, 97
  %v530 = vld [vmem:[%s529] sm:$0x8]
  %vm531 = vcmask 1043459
  %v532 = vsel %vm531, %v530, %v528
  %s533 = scalar_lea.vmem %s0, 128
  %v534 = vld [vmem:[%s533] sm:$0x10]
  %vm535 = vcmask 1044484
  %v536 = vsel %vm535, %v534, %v532
  %s537 = scalar_lea.vmem %s0, 159
  %v538 = vld [vmem:[%s537] sm:$0x20]
  %vm539 = vcmask 1045509
  %v540 = vsel %vm539, %v538, %v536
  %s541 = scalar_lea.vmem %s0, 190
  %v542 = vld [vmem:[%s541] sm:$0x40]
  %vm543 = vcmask 1046534
  %v544 = vsel %vm543, %v542, %v540
  %s545 = scalar_lea.vmem %s0, 221
  %v546 = vld [vmem:[%s545] sm:$0x80]
  %vm547 = vcmask 1047559
  %v548 = vsel %vm547, %v546, %v544
  %549 = vrot.lane.b32.xlu0 %v548, 64
  %v550 = vpop.permute.xlu0 %549
  %vm551 = vcmask 654848
  %552 = vst.msk [vmem:[%s1] sm:$0xff] %vm551, %v550
  %s553 = scalar_lea.vmem %s0, 260
  %s554 = smov 3
  %v555 = vld [vmem:[%s553] ss:$-248 sm:%s554]
  %s556 = scalar_lea.vmem %s0, 42
  %v557 = vld [vmem:[%s556] sm:$0x4]
  %vm558 = vcmask 1042434
  %v559 = vsel %vm558, %v557, %v555
  %s560 = scalar_lea.vmem %s0, 73
  %v561 = vld [vmem:[%s560] sm:$0x8]
  %vm562 = vcmask 1043459
  %v563 = vsel %vm562, %v561, %v559
  %s564 = scalar_lea.vmem %s0, 104
  %v565 = vld [vmem:[%s564] sm:$0x10]
  %vm566 = vcmask 1044484
  %v567 = vsel %vm566, %v565, %v563
  %s568 = scalar_lea.vmem %s0, 135
  %v569 = vld [vmem:[%s568] sm:$0x20]
  %vm570 = vcmask 1045509
  %v571 = vsel %vm570, %v569, %v567
  %s572 = scalar_lea.vmem %s0, 166
  %v573 = vld [vmem:[%s572] sm:$0x40]
  %vm574 = vcmask 1046534
  %v575 = vsel %vm574, %v573, %v571
  %s576 = scalar_lea.vmem %s0, 197
  %v577 = vld [vmem:[%s576] sm:$0x80]
  %vm578 = vcmask 1047559
  %v579 = vsel %vm578, %v577, %v575
  %580 = vrot.lane.b32.xlu0 %v579, 64
  %v581 = vpop.permute.xlu0 %580
  %vm582 = vcmask 654848
  %s583 = scalar_lea.vmem %s1, 32
  %584 = vst.msk [vmem:[%s583] ss:$-24 sm:$0x3] %vm582, %v581
  %s585 = scalar_lea.vmem %s1, 7
  %586 = vst.msk [vmem:[%s585] sm:$0xfc] %vm582, %v581
  %s587 = scalar_lea.vmem %s0, 268
  %v588 = vld [vmem:[%s587] sm:$0x1]
  %s589 = scalar_lea.vmem %s0, 452
  %s590 = smov 6
  %v591 = vld [vmem:[%s589] ss:$-216 sm:%s590]
  %vm592 = vcmask 1042433
  %v593 = vsel %vm592, %v591, %v588
  %s594 = scalar_lea.vmem %s0, 49
  %v595 = vld [vmem:[%s594] sm:$0x8]
  %vm596 = vcmask 1043459
  %v597 = vsel %vm596, %v595, %v593
  %s598 = scalar_lea.vmem %s0, 80
  %v599 = vld [vmem:[%s598] sm:$0x10]
  %vm600 = vcmask 1044484
  %v601 = vsel %vm600, %v599, %v597
  %s602 = scalar_lea.vmem %s0, 111
  %v603 = vld [vmem:[%s602] sm:$0x20]
  %vm604 = vcmask 1045509
  %v605 = vsel %vm604, %v603, %v601
  %s606 = scalar_lea.vmem %s0, 142
  %v607 = vld [vmem:[%s606] sm:$0x40]
  %vm608 = vcmask 1046534
  %v609 = vsel %vm608, %v607, %v605
  %s610 = scalar_lea.vmem %s0, 173
  %v611 = vld [vmem:[%s610] sm:$0x80]
  %vm612 = vcmask 1047559
  %v613 = vsel %vm612, %v611, %v609
  %614 = vrot.lane.b32.xlu0 %v613, 64
  %v615 = vpop.permute.xlu0 %614
  %vm616 = vcmask 654848
  %s617 = scalar_lea.vmem %s1, 40
  %618 = vst.msk [vmem:[%s617] ss:$-25 sm:$0x3] %vm616, %v615
  %s619 = scalar_lea.vmem %s1, 14
  %620 = vst.msk [vmem:[%s619] sm:$0xfc] %vm616, %v615
  %s621 = scalar_lea.vmem %s0, 276
  %v622 = vld [vmem:[%s621] sm:$0x1]
  %s623 = scalar_lea.vmem %s0, 211
  %v624 = vld [vmem:[%s623] sm:$0x2]
  %vm625 = vcmask 1041409
  %v626 = vsel %vm625, %v624, %v622
  %s627 = scalar_lea.vmem %s0, 676
  %s628 = smov 12
  %v629 = vld [vmem:[%s627] ss:$-216 sm:%s628]
  %vm630 = vcmask 1043458
  %v631 = vsel %vm630, %v629, %v626
  %s632 = scalar_lea.vmem %s0, 56
  %v633 = vld [vmem:[%s632] sm:$0x10]
  %vm634 = vcmask 1044484
  %v635 = vsel %vm634, %v633, %v631
  %s636 = scalar_lea.vmem %s0, 87
  %v637 = vld [vmem:[%s636] sm:$0x20]
  %vm638 = vcmask 1045509
  %v639 = vsel %vm638, %v637, %v635
  %s640 = scalar_lea.vmem %s0, 118
  %v641 = vld [vmem:[%s640] sm:$0x40]
  %vm642 = vcmask 1046534
  %v643 = vsel %vm642, %v641, %v639
  %s644 = scalar_lea.vmem %s0, 149
  %v645 = vld [vmem:[%s644] sm:$0x80]
  %vm646 = vcmask 1047559
  %v647 = vsel %vm646, %v645, %v643
  %648 = vrot.lane.b32.xlu0 %v647, 64
  %v649 = vpop.permute.xlu0 %648
  %vm650 = vcmask 654848
  %s651 = scalar_lea.vmem %s1, 48
  %652 = vst.msk [vmem:[%s651] ss:$-26 sm:$0x3] %vm650, %v649
  %s653 = scalar_lea.vmem %s1, 21
  %654 = vst.msk [vmem:[%s653] sm:$0xfc] %vm650, %v649
  %s655 = scalar_lea.vmem %s0, 284
  %v656 = vld [vmem:[%s655] sm:$0x1]
  %s657 = scalar_lea.vmem %s0, 187
  %v658 = vld [vmem:[%s657] sm:$0x2]
  %vm659 = vcmask 1041409
  %v660 = vsel %vm659, %v658, %v656
  %s661 = scalar_lea.vmem %s0, 218
  %v662 = vld [vmem:[%s661] sm:$0x4]
  %vm663 = vcmask 1042434
  %v664 = vsel %vm663, %v662, %v660
  %s665 = scalar_lea.vmem %s0, 249
  %v666 = vld [vmem:[%s665] sm:$0x8]
  %vm667 = vcmask 1043459
  %v668 = vsel %vm667, %v666, %v664
  %669 = vrot.lane.b32.xlu0 %v668, 64
  %v670 = vpop.permute.xlu0 %669
  %vm671 = vcmask 654848
  %s672 = scalar_lea.vmem %s1, 56
  %673 = vst.msk [vmem:[%s672] ss:$-27 sm:$0x3] %vm671, %v670
  %s674 = scalar_lea.vmem %s1, 28
  %675 = vst.msk [vmem:[%s674] sm:$0xc] %vm671, %v670
  %s676 = scalar_lea.vmem %s0, 3
  %v677 = vld [vmem:[%s676] sm:$0x1]
  %s678 = scalar_lea.vmem %s0, 34
  %v679 = vld [vmem:[%s678] sm:$0x2]
  %vm680 = vcmask 1041409
  %v681 = vsel %vm680, %v679, %v677
  %s682 = scalar_lea.vmem %s0, 65
  %v683 = vld [vmem:[%s682] sm:$0x4]
  %vm684 = vcmask 1042434
  %v685 = vsel %vm684, %v683, %v681
  %s686 = scalar_lea.vmem %s0, 96
  %v687 = vld [vmem:[%s686] sm:$0x8]
  %vm688 = vcmask 1043459
  %v689 = vsel %vm688, %v687, %v685
  %s690 = scalar_lea.vmem %s0, 127
  %v691 = vld [vmem:[%s690] sm:$0x10]
  %vm692 = vcmask 1044484
  %v693 = vsel %vm692, %v691, %v689
  %s694 = scalar_lea.vmem %s0, 158
  %v695 = vld [vmem:[%s694] sm:$0x20]
  %vm696 = vcmask 1045509
  %v697 = vsel %vm696, %v695, %v693
  %s698 = scalar_lea.vmem %s0, 189
  %v699 = vld [vmem:[%s698] sm:$0x40]
  %vm700 = vcmask 1046534
  %v701 = vsel %vm700, %v699, %v697
  %s702 = scalar_lea.vmem %s0, 220
  %v703 = vld [vmem:[%s702] sm:$0x80]
  %vm704 = vcmask 1047559
  %v705 = vsel %vm704, %v703, %v701
  %706 = vrot.lane.b32.xlu0 %v705, 48
  %v707 = vpop.permute.xlu0 %706
  %vm708 = vcmask 523648
  %709 = vst.msk [vmem:[%s1] sm:$0xff] %vm708, %v707
  %s710 = scalar_lea.vmem %s0, 259
  %s711 = smov 3
  %v712 = vld [vmem:[%s710] ss:$-248 sm:%s711]
  %s713 = scalar_lea.vmem %s0, 41
  %v714 = vld [vmem:[%s713] sm:$0x4]
  %vm715 = vcmask 1042434
  %v716 = vsel %vm715, %v714, %v712
  %s717 = scalar_lea.vmem %s0, 72
  %v718 = vld [vmem:[%s717] sm:$0x8]
  %vm719 = vcmask 1043459
  %v720 = vsel %vm719, %v718, %v716
  %s721 = scalar_lea.vmem %s0, 103
  %v722 = vld [vmem:[%s721] sm:$0x10]
  %vm723 = vcmask 1044484
  %v724 = vsel %vm723, %v722, %v720
  %s725 = scalar_lea.vmem %s0, 134
  %v726 = vld [vmem:[%s725] sm:$0x20]
  %vm727 = vcmask 1045509
  %v728 = vsel %vm727, %v726, %v724
  %s729 = scalar_lea.vmem %s0, 165
  %v730 = vld [vmem:[%s729] sm:$0x40]
  %vm731 = vcmask 1046534
  %v732 = vsel %vm731, %v730, %v728
  %s733 = scalar_lea.vmem %s0, 196
  %v734 = vld [vmem:[%s733] sm:$0x80]
  %vm735 = vcmask 1047559
  %v736 = vsel %vm735, %v734, %v732
  %737 = vrot.lane.b32.xlu0 %v736, 48
  %v738 = vpop.permute.xlu0 %737
  %vm739 = vcmask 523648
  %s740 = scalar_lea.vmem %s1, 32
  %741 = vst.msk [vmem:[%s740] ss:$-24 sm:$0x3] %vm739, %v738
  %s742 = scalar_lea.vmem %s1, 7
  %743 = vst.msk [vmem:[%s742] sm:$0xfc] %vm739, %v738
  %s744 = scalar_lea.vmem %s0, 267
  %v745 = vld [vmem:[%s744] sm:$0x1]
  %s746 = scalar_lea.vmem %s0, 451
  %s747 = smov 6
  %v748 = vld [vmem:[%s746] ss:$-216 sm:%s747]
  %vm749 = vcmask 1042433
  %v750 = vsel %vm749, %v748, %v745
  %s751 = scalar_lea.vmem %s0, 48
  %v752 = vld [vmem:[%s751] sm:$0x8]
  %vm753 = vcmask 1043459
  %v754 = vsel %vm753, %v752, %v750
  %s755 = scalar_lea.vmem %s0, 79
  %v756 = vld [vmem:[%s755] sm:$0x10]
  %vm757 = vcmask 1044484
  %v758 = vsel %vm757, %v756, %v754
  %s759 = scalar_lea.vmem %s0, 110
  %v760 = vld [vmem:[%s759] sm:$0x20]
  %vm761 = vcmask 1045509
  %v762 = vsel %vm761, %v760, %v758
  %s763 = scalar_lea.vmem %s0, 141
  %v764 = vld [vmem:[%s763] sm:$0x40]
  %vm765 = vcmask 1046534
  %v766 = vsel %vm765, %v764, %v762
  %s767 = scalar_lea.vmem %s0, 172
  %v768 = vld [vmem:[%s767] sm:$0x80]
  %vm769 = vcmask 1047559
  %v770 = vsel %vm769, %v768, %v766
  %771 = vrot.lane.b32.xlu0 %v770, 48
  %v772 = vpop.permute.xlu0 %771
  %vm773 = vcmask 523648
  %s774 = scalar_lea.vmem %s1, 40
  %775 = vst.msk [vmem:[%s774] ss:$-25 sm:$0x3] %vm773, %v772
  %s776 = scalar_lea.vmem %s1, 14
  %777 = vst.msk [vmem:[%s776] sm:$0xfc] %vm773, %v772
  %s778 = scalar_lea.vmem %s0, 275
  %v779 = vld [vmem:[%s778] sm:$0x1]
  %s780 = scalar_lea.vmem %s0, 210
  %v781 = vld [vmem:[%s780] sm:$0x2]
  %vm782 = vcmask 1041409
  %v783 = vsel %vm782, %v781, %v779
  %s784 = scalar_lea.vmem %s0, 675
  %s785 = smov 12
  %v786 = vld [vmem:[%s784] ss:$-216 sm:%s785]
  %vm787 = vcmask 1043458
  %v788 = vsel %vm787, %v786, %v783
  %s789 = scalar_lea.vmem %s0, 55
  %v790 = vld [vmem:[%s789] sm:$0x10]
  %vm791 = vcmask 1044484
  %v792 = vsel %vm791, %v790, %v788
  %s793 = scalar_lea.vmem %s0, 86
  %v794 = vld [vmem:[%s793] sm:$0x20]
  %vm795 = vcmask 1045509
  %v796 = vsel %vm795, %v794, %v792
  %s797 = scalar_lea.vmem %s0, 117
  %v798 = vld [vmem:[%s797] sm:$0x40]
  %vm799 = vcmask 1046534
  %v800 = vsel %vm799, %v798, %v796
  %s801 = scalar_lea.vmem %s0, 148
  %v802 = vld [vmem:[%s801] sm:$0x80]
  %vm803 = vcmask 1047559
  %v804 = vsel %vm803, %v802, %v800
  %805 = vrot.lane.b32.xlu0 %v804, 48
  %v806 = vpop.permute.xlu0 %805
  %vm807 = vcmask 523648
  %s808 = scalar_lea.vmem %s1, 48
  %809 = vst.msk [vmem:[%s808] ss:$-26 sm:$0x3] %vm807, %v806
  %s810 = scalar_lea.vmem %s1, 21
  %811 = vst.msk [vmem:[%s810] sm:$0xfc] %vm807, %v806
  %s812 = scalar_lea.vmem %s0, 283
  %v813 = vld [vmem:[%s812] sm:$0x1]
  %s814 = scalar_lea.vmem %s0, 186
  %v815 = vld [vmem:[%s814] sm:$0x2]
  %vm816 = vcmask 1041409
  %v817 = vsel %vm816, %v815, %v813
  %s818 = scalar_lea.vmem %s0, 217
  %v819 = vld [vmem:[%s818] sm:$0x4]
  %vm820 = vcmask 1042434
  %v821 = vsel %vm820, %v819, %v817
  %s822 = scalar_lea.vmem %s0, 248
  %v823 = vld [vmem:[%s822] sm:$0x8]
  %vm824 = vcmask 1043459
  %v825 = vsel %vm824, %v823, %v821
  %826 = vrot.lane.b32.xlu0 %v825, 48
  %v827 = vpop.permute.xlu0 %826
  %vm828 = vcmask 523648
  %s829 = scalar_lea.vmem %s1, 56
  %830 = vst.msk [vmem:[%s829] ss:$-27 sm:$0x3] %vm828, %v827
  %s831 = scalar_lea.vmem %s1, 28
  %832 = vst.msk [vmem:[%s831] sm:$0xc] %vm828, %v827
  %s833 = scalar_lea.vmem %s0, 2
  %v834 = vld [vmem:[%s833] sm:$0x1]
  %s835 = scalar_lea.vmem %s0, 33
  %v836 = vld [vmem:[%s835] sm:$0x2]
  %vm837 = vcmask 1041409
  %v838 = vsel %vm837, %v836, %v834
  %s839 = scalar_lea.vmem %s0, 64
  %v840 = vld [vmem:[%s839] sm:$0x4]
  %vm841 = vcmask 1042434
  %v842 = vsel %vm841, %v840, %v838
  %s843 = scalar_lea.vmem %s0, 95
  %v844 = vld [vmem:[%s843] sm:$0x8]
  %vm845 = vcmask 1043459
  %v846 = vsel %vm845, %v844, %v842
  %s847 = scalar_lea.vmem %s0, 126
  %v848 = vld [vmem:[%s847] sm:$0x10]
  %vm849 = vcmask 1044484
  %v850 = vsel %vm849, %v848, %v846
  %s851 = scalar_lea.vmem %s0, 157
  %v852 = vld [vmem:[%s851] sm:$0x20]
  %vm853 = vcmask 1045509
  %v854 = vsel %vm853, %v852, %v850
  %s855 = scalar_lea.vmem %s0, 188
  %v856 = vld [vmem:[%s855] sm:$0x40]
  %vm857 = vcmask 1046534
  %v858 = vsel %vm857, %v856, %v854
  %s859 = scalar_lea.vmem %s0, 219
  %v860 = vld [vmem:[%s859] sm:$0x80]
  %vm861 = vcmask 1047559
  %v862 = vsel %vm861, %v860, %v858
  %863 = vrot.lane.b32.xlu0 %v862, 32
  %v864 = vpop.permute.xlu0 %863
  %vm865 = vcmask 392448
  %866 = vst.msk [vmem:[%s1] sm:$0xff] %vm865, %v864
  %s867 = scalar_lea.vmem %s0, 258
  %s868 = smov 3
  %v869 = vld [vmem:[%s867] ss:$-248 sm:%s868]
  %s870 = scalar_lea.vmem %s0, 40
  %v871 = vld [vmem:[%s870] sm:$0x4]
  %vm872 = vcmask 1042434
  %v873 = vsel %vm872, %v871, %v869
  %s874 = scalar_lea.vmem %s0, 71
  %v875 = vld [vmem:[%s874] sm:$0x8]
  %vm876 = vcmask 1043459
  %v877 = vsel %vm876, %v875, %v873
  %s878 = scalar_lea.vmem %s0, 102
  %v879 = vld [vmem:[%s878] sm:$0x10]
  %vm880 = vcmask 1044484
  %v881 = vsel %vm880, %v879, %v877
  %s882 = scalar_lea.vmem %s0, 133
  %v883 = vld [vmem:[%s882] sm:$0x20]
  %vm884 = vcmask 1045509
  %v885 = vsel %vm884, %v883, %v881
  %s886 = scalar_lea.vmem %s0, 164
  %v887 = vld [vmem:[%s886] sm:$0x40]
  %vm888 = vcmask 1046534
  %v889 = vsel %vm888, %v887, %v885
  %s890 = scalar_lea.vmem %s0, 195
  %v891 = vld [vmem:[%s890] sm:$0x80]
  %vm892 = vcmask 1047559
  %v893 = vsel %vm892, %v891, %v889
  %894 = vrot.lane.b32.xlu0 %v893, 32
  %v895 = vpop.permute.xlu0 %894
  %vm896 = vcmask 392448
  %s897 = scalar_lea.vmem %s1, 32
  %898 = vst.msk [vmem:[%s897] ss:$-24 sm:$0x3] %vm896, %v895
  %s899 = scalar_lea.vmem %s1, 7
  %900 = vst.msk [vmem:[%s899] sm:$0xfc] %vm896, %v895
  %s901 = scalar_lea.vmem %s0, 266
  %v902 = vld [vmem:[%s901] sm:$0x1]
  %s903 = scalar_lea.vmem %s0, 450
  %s904 = smov 6
  %v905 = vld [vmem:[%s903] ss:$-216 sm:%s904]
  %vm906 = vcmask 1042433
  %v907 = vsel %vm906, %v905, %v902
  %s908 = scalar_lea.vmem %s0, 47
  %v909 = vld [vmem:[%s908] sm:$0x8]
  %vm910 = vcmask 1043459
  %v911 = vsel %vm910, %v909, %v907
  %s912 = scalar_lea.vmem %s0, 78
  %v913 = vld [vmem:[%s912] sm:$0x10]
  %vm914 = vcmask 1044484
  %v915 = vsel %vm914, %v913, %v911
  %s916 = scalar_lea.vmem %s0, 109
  %v917 = vld [vmem:[%s916] sm:$0x20]
  %vm918 = vcmask 1045509
  %v919 = vsel %vm918, %v917, %v915
  %s920 = scalar_lea.vmem %s0, 140
  %v921 = vld [vmem:[%s920] sm:$0x40]
  %vm922 = vcmask 1046534
  %v923 = vsel %vm922, %v921, %v919
  %s924 = scalar_lea.vmem %s0, 171
  %v925 = vld [vmem:[%s924] sm:$0x80]
  %vm926 = vcmask 1047559
  %v927 = vsel %vm926, %v925, %v923
  %928 = vrot.lane.b32.xlu0 %v927, 32
  %v929 = vpop.permute.xlu0 %928
  %vm930 = vcmask 392448
  %s931 = scalar_lea.vmem %s1, 40
  %932 = vst.msk [vmem:[%s931] ss:$-25 sm:$0x3] %vm930, %v929
  %s933 = scalar_lea.vmem %s1, 14
  %934 = vst.msk [vmem:[%s933] sm:$0xfc] %vm930, %v929
  %s935 = scalar_lea.vmem %s0, 274
  %v936 = vld [vmem:[%s935] sm:$0x1]
  %s937 = scalar_lea.vmem %s0, 209
  %v938 = vld [vmem:[%s937] sm:$0x2]
  %vm939 = vcmask 1041409
  %v940 = vsel %vm939, %v938, %v936
  %s941 = scalar_lea.vmem %s0, 674
  %s942 = smov 12
  %v943 = vld [vmem:[%s941] ss:$-216 sm:%s942]
  %vm944 = vcmask 1043458
  %v945 = vsel %vm944, %v943, %v940
  %s946 = scalar_lea.vmem %s0, 54
  %v947 = vld [vmem:[%s946] sm:$0x10]
  %vm948 = vcmask 1044484
  %v949 = vsel %vm948, %v947, %v945
  %s950 = scalar_lea.vmem %s0, 85
  %v951 = vld [vmem:[%s950] sm:$0x20]
  %vm952 = vcmask 1045509
  %v953 = vsel %vm952, %v951, %v949
  %s954 = scalar_lea.vmem %s0, 116
  %v955 = vld [vmem:[%s954] sm:$0x40]
  %vm956 = vcmask 1046534
  %v957 = vsel %vm956, %v955, %v953
  %s958 = scalar_lea.vmem %s0, 147
  %v959 = vld [vmem:[%s958] sm:$0x80]
  %vm960 = vcmask 1047559
  %v961 = vsel %vm960, %v959, %v957
  %962 = vrot.lane.b32.xlu0 %v961, 32
  %v963 = vpop.permute.xlu0 %962
  %vm964 = vcmask 392448
  %s965 = scalar_lea.vmem %s1, 48
  %966 = vst.msk [vmem:[%s965] ss:$-26 sm:$0x3] %vm964, %v963
  %s967 = scalar_lea.vmem %s1, 21
  %968 = vst.msk [vmem:[%s967] sm:$0xfc] %vm964, %v963
  %s969 = scalar_lea.vmem %s0, 282
  %v970 = vld [vmem:[%s969] sm:$0x1]
  %s971 = scalar_lea.vmem %s0, 185
  %v972 = vld [vmem:[%s971] sm:$0x2]
  %vm973 = vcmask 1041409
  %v974 = vsel %vm973, %v972, %v970
  %s975 = scalar_lea.vmem %s0, 216
  %v976 = vld [vmem:[%s975] sm:$0x4]
  %vm977 = vcmask 1042434
  %v978 = vsel %vm977, %v976, %v974
  %s979 = scalar_lea.vmem %s0, 247
  %v980 = vld [vmem:[%s979] sm:$0x8]
  %vm981 = vcmask 1043459
  %v982 = vsel %vm981, %v980, %v978
  %983 = vrot.lane.b32.xlu0 %v982, 32
  %v984 = vpop.permute.xlu0 %983
  %vm985 = vcmask 392448
  %s986 = scalar_lea.vmem %s1, 56
  %987 = vst.msk [vmem:[%s986] ss:$-27 sm:$0x3] %vm985, %v984
  %s988 = scalar_lea.vmem %s1, 28
  %989 = vst.msk [vmem:[%s988] sm:$0xc] %vm985, %v984
  %s990 = scalar_lea.vmem %s0, 1
  %v991 = vld [vmem:[%s990] sm:$0x1]
  %s992 = scalar_lea.vmem %s0, 32
  %v993 = vld [vmem:[%s992] sm:$0x2]
  %vm994 = vcmask 1041409
  %v995 = vsel %vm994, %v993, %v991
  %s996 = scalar_lea.vmem %s0, 63
  %v997 = vld [vmem:[%s996] sm:$0x4]
  %vm998 = vcmask 1042434
  %v999 = vsel %vm998, %v997, %v995
  %s1000 = scalar_lea.vmem %s0, 94
  %v1001 = vld [vmem:[%s1000] sm:$0x8]
  %vm1002 = vcmask 1043459
  %v1003 = vsel %vm1002, %v1001, %v999
  %s1004 = scalar_lea.vmem %s0, 125
  %v1005 = vld [vmem:[%s1004] sm:$0x10]
  %vm1006 = vcmask 1044484
  %v1007 = vsel %vm1006, %v1005, %v1003
  %s1008 = scalar_lea.vmem %s0, 156
  %v1009 = vld [vmem:[%s1008] sm:$0x20]
  %vm1010 = vcmask 1045509
  %v1011 = vsel %vm1010, %v1009, %v1007
  %s1012 = scalar_lea.vmem %s0, 187
  %v1013 = vld [vmem:[%s1012] sm:$0x40]
  %vm1014 = vcmask 1046534
  %v1015 = vsel %vm1014, %v1013, %v1011
  %s1016 = scalar_lea.vmem %s0, 218
  %v1017 = vld [vmem:[%s1016] sm:$0x80]
  %vm1018 = vcmask 1047559
  %v1019 = vsel %vm1018, %v1017, %v1015
  %1020 = vrot.lane.b32.xlu0 %v1019, 16
  %v1021 = vpop.permute.xlu0 %1020
  %vm1022 = vcmask 261248
  %1023 = vst.msk [vmem:[%s1] sm:$0xff] %vm1022, %v1021
  %s1024 = scalar_lea.vmem %s0, 257
  %s1025 = smov 3
  %v1026 = vld [vmem:[%s1024] ss:$-248 sm:%s1025]
  %s1027 = scalar_lea.vmem %s0, 39
  %v1028 = vld [vmem:[%s1027] sm:$0x4]
  %vm1029 = vcmask 1042434
  %v1030 = vsel %vm1029, %v1028, %v1026
  %s1031 = scalar_lea.vmem %s0, 70
  %v1032 = vld [vmem:[%s1031] sm:$0x8]
  %vm1033 = vcmask 1043459
  %v1034 = vsel %vm1033, %v1032, %v1030
  %s1035 = scalar_lea.vmem %s0, 101
  %v1036 = vld [vmem:[%s1035] sm:$0x10]
  %vm1037 = vcmask 1044484
  %v1038 = vsel %vm1037, %v1036, %v1034
  %s1039 = scalar_lea.vmem %s0, 132
  %v1040 = vld [vmem:[%s1039] sm:$0x20]
  %vm1041 = vcmask 1045509
  %v1042 = vsel %vm1041, %v1040, %v1038
  %s1043 = scalar_lea.vmem %s0, 163
  %v1044 = vld [vmem:[%s1043] sm:$0x40]
  %vm1045 = vcmask 1046534
  %v1046 = vsel %vm1045, %v1044, %v1042
  %s1047 = scalar_lea.vmem %s0, 194
  %v1048 = vld [vmem:[%s1047] sm:$0x80]
  %vm1049 = vcmask 1047559
  %v1050 = vsel %vm1049, %v1048, %v1046
  %1051 = vrot.lane.b32.xlu0 %v1050, 16
  %v1052 = vpop.permute.xlu0 %1051
  %vm1053 = vcmask 261248
  %s1054 = scalar_lea.vmem %s1, 32
  %1055 = vst.msk [vmem:[%s1054] ss:$-24 sm:$0x3] %vm1053, %v1052
  %s1056 = scalar_lea.vmem %s1, 7
  %1057 = vst.msk [vmem:[%s1056] sm:$0xfc] %vm1053, %v1052
  %s1058 = scalar_lea.vmem %s0, 265
  %v1059 = vld [vmem:[%s1058] sm:$0x1]
  %s1060 = scalar_lea.vmem %s0, 449
  %s1061 = smov 6
  %v1062 = vld [vmem:[%s1060] ss:$-216 sm:%s1061]
  %vm1063 = vcmask 1042433
  %v1064 = vsel %vm1063, %v1062, %v1059
  %s1065 = scalar_lea.vmem %s0, 46
  %v1066 = vld [vmem:[%s1065] sm:$0x8]
  %vm1067 = vcmask 1043459
  %v1068 = vsel %vm1067, %v1066, %v1064
  %s1069 = scalar_lea.vmem %s0, 77
  %v1070 = vld [vmem:[%s1069] sm:$0x10]
  %vm1071 = vcmask 1044484
  %v1072 = vsel %vm1071, %v1070, %v1068
  %s1073 = scalar_lea.vmem %s0, 108
  %v1074 = vld [vmem:[%s1073] sm:$0x20]
  %vm1075 = vcmask 1045509
  %v1076 = vsel %vm1075, %v1074, %v1072
  %s1077 = scalar_lea.vmem %s0, 139
  %v1078 = vld [vmem:[%s1077] sm:$0x40]
  %vm1079 = vcmask 1046534
  %v1080 = vsel %vm1079, %v1078, %v1076
  %s1081 = scalar_lea.vmem %s0, 170
  %v1082 = vld [vmem:[%s1081] sm:$0x80]
  %vm1083 = vcmask 1047559
  %v1084 = vsel %vm1083, %v1082, %v1080
  %1085 = vrot.lane.b32.xlu0 %v1084, 16
  %v1086 = vpop.permute.xlu0 %1085
  %vm1087 = vcmask 261248
  %s1088 = scalar_lea.vmem %s1, 40
  %1089 = vst.msk [vmem:[%s1088] ss:$-25 sm:$0x3] %vm1087, %v1086
  %s1090 = scalar_lea.vmem %s1, 14
  %1091 = vst.msk [vmem:[%s1090] sm:$0xfc] %vm1087, %v1086
  %s1092 = scalar_lea.vmem %s0, 273
  %v1093 = vld [vmem:[%s1092] sm:$0x1]
  %s1094 = scalar_lea.vmem %s0, 208
  %v1095 = vld [vmem:[%s1094] sm:$0x2]
  %vm1096 = vcmask 1041409
  %v1097 = vsel %vm1096, %v1095, %v1093
  %s1098 = scalar_lea.vmem %s0, 673
  %s1099 = smov 12
  %v1100 = vld [vmem:[%s1098] ss:$-216 sm:%s1099]
  %vm1101 = vcmask 1043458
  %v1102 = vsel %vm1101, %v1100, %v1097
  %s1103 = scalar_lea.vmem %s0, 53
  %v1104 = vld [vmem:[%s1103] sm:$0x10]
  %vm1105 = vcmask 1044484
  %v1106 = vsel %vm1105, %v1104, %v1102
  %s1107 = scalar_lea.vmem %s0, 84
  %v1108 = vld [vmem:[%s1107] sm:$0x20]
  %vm1109 = vcmask 1045509
  %v1110 = vsel %vm1109, %v1108, %v1106
  %s1111 = scalar_lea.vmem %s0, 115
  %v1112 = vld [vmem:[%s1111] sm:$0x40]
  %vm1113 = vcmask 1046534
  %v1114 = vsel %vm1113, %v1112, %v1110
  %s1115 = scalar_lea.vmem %s0, 146
  %v1116 = vld [vmem:[%s1115] sm:$0x80]
  %vm1117 = vcmask 1047559
  %v1118 = vsel %vm1117, %v1116, %v1114
  %1119 = vrot.lane.b32.xlu0 %v1118, 16
  %v1120 = vpop.permute.xlu0 %1119
  %vm1121 = vcmask 261248
  %s1122 = scalar_lea.vmem %s1, 48
  %1123 = vst.msk [vmem:[%s1122] ss:$-26 sm:$0x3] %vm1121, %v1120
  %s1124 = scalar_lea.vmem %s1, 21
  %1125 = vst.msk [vmem:[%s1124] sm:$0xfc] %vm1121, %v1120
  %s1126 = scalar_lea.vmem %s0, 281
  %v1127 = vld [vmem:[%s1126] sm:$0x1]
  %s1128 = scalar_lea.vmem %s0, 184
  %v1129 = vld [vmem:[%s1128] sm:$0x2]
  %vm1130 = vcmask 1041409
  %v1131 = vsel %vm1130, %v1129, %v1127
  %s1132 = scalar_lea.vmem %s0, 215
  %v1133 = vld [vmem:[%s1132] sm:$0x4]
  %vm1134 = vcmask 1042434
  %v1135 = vsel %vm1134, %v1133, %v1131
  %s1136 = scalar_lea.vmem %s0, 246
  %v1137 = vld [vmem:[%s1136] sm:$0x8]
  %vm1138 = vcmask 1043459
  %v1139 = vsel %vm1138, %v1137, %v1135
  %1140 = vrot.lane.b32.xlu0 %v1139, 16
  %v1141 = vpop.permute.xlu0 %1140
  %vm1142 = vcmask 261248
  %s1143 = scalar_lea.vmem %s1, 56
  %1144 = vst.msk [vmem:[%s1143] ss:$-27 sm:$0x3] %vm1142, %v1141
  %s1145 = scalar_lea.vmem %s1, 28
  %1146 = vst.msk [vmem:[%s1145] sm:$0xc] %vm1142, %v1141

// kernel: decoder_forward.1
$region0: #{decoder_forward.1}
  #allocation0 [shape = 'u32[]', space=smem, size = 0x4, offset = 0x4, fixed_abs, tag = 'smem constant byte address 0x4 - core index']
  #allocation1 [shape = 'u32[144,128]{1,0:T(1,128)}', space=vmem, size = 0x12000, scoped, tag = 'internal scratch']
  #allocation2 [shape = 'f32[8,546]{1,0:T(8,128)}', space=vmem, size = 0x5000, scoped, tag = 'scratch operand']
  %s0 = inlined_call_operand.vmem [shape: f32[9,512], index: 0, kind: input, shape index: {}]
  %s1 = inlined_call_operand.vmem [shape: f32[4,512], index: 1, kind: input, shape index: {}]
  %s2 = inlined_call_operand.vmem [shape: f32[4,512], index: 2, kind: input, shape index: {}]
  %s3 = inlined_call_operand.vmem [shape: f32[8,72], index: 3, kind: input, shape index: {}]
  %s4 = inlined_call_operand.vmem [shape: f32[8,1], index: 4, kind: input, shape index: {}]
  %s5 = inlined_call_operand.vmem [shape: f32[8,1], index: 5, kind: input, shape index: {}]
  %s6 = inlined_call_operand.vmem [shape: f32[8,72], index: 6, kind: input, shape index: {}]
  %s7 = inlined_call_operand.vmem [shape: f32[8,1], index: 7, kind: input, shape index: {}]
  %s8 = inlined_call_operand.vmem [shape: f32[8,1], index: 8, kind: input, shape index: {}]
  %s9 = inlined_call_operand.vmem [shape: f32[8,72], index: 9, kind: input, shape index: {}]
  %s10 = inlined_call_operand.vmem [shape: f32[8,1], index: 10, kind: input, shape index: {}]
  %s11 = inlined_call_operand.vmem [shape: f32[8,1], index: 11, kind: input, shape index: {}]
  %s12 = inlined_call_operand.vmem [shape: f32[8,512], index: 12, kind: output, shape index: {}]
  %s13 = sld [smem:[#allocation0]]
  $region58: #{decoder_forward.1} parent=0
    _
  %s15 = ssub.s32 1, %s13
  %s16 = scalar_select 0, %s15, %s13
  // Predicated region
  $region2: #{decoder_forward.1} parent=0 // pred_check
    _
  $region3: #{decoder_forward.1} parent=0 // pred_check_branch
    %18 = sbr.rel (0) target = $region5
  $region4: #{decoder_forward.1} parent=0 // pred_region
    _
  $region5: #{decoder_forward.1} parent=0 // pred_fallthru
    _
  // Predicated region
  $region6: #{decoder_forward.1} parent=0 // pred_check
    _
  $region7: #{decoder_forward.1} parent=0 // pred_check_branch
    %20 = sbr.rel (0) target = $region9
  $region8: #{decoder_forward.1} parent=0 // pred_region
    _
  $region9: #{decoder_forward.1} parent=0 // pred_fallthru
    _
  // Predicated region
  $region10: #{decoder_forward.1} parent=0 // pred_check
    _
  $region11: #{decoder_forward.1} parent=0 // pred_check_branch
    %22 = sbr.rel (0) target = $region13
  $region12: #{decoder_forward.1} parent=0 // pred_region
    _
  $region13: #{decoder_forward.1} parent=0 // pred_fallthru
    _
  // Predicated region
  $region14: #{decoder_forward.1} parent=0 // pred_check
    _
  $region15: #{decoder_forward.1} parent=0 // pred_check_branch
    %24 = sbr.rel (0) target = $region17
  $region16: #{decoder_forward.1} parent=0 // pred_region
    _
  $region17: #{decoder_forward.1} parent=0 // pred_fallthru
    _
  // Predicated region
  $region18: #{decoder_forward.1} parent=0 // pred_check
    _
  $region19: #{decoder_forward.1} parent=0 // pred_check_branch
    %26 = sbr.rel (0) target = $region21
  $region20: #{decoder_forward.1} parent=0 // pred_region
    _
  $region21: #{decoder_forward.1} parent=0 // pred_fallthru
    _
  // Predicated region
  $region22: #{decoder_forward.1} parent=0 // pred_check
    _
  $region23: #{decoder_forward.1} parent=0 // pred_check_branch
    %28 = sbr.rel (0) target = $region25
  $region24: #{decoder_forward.1} parent=0 // pred_region
    _
  $region25: #{decoder_forward.1} parent=0 // pred_fallthru
    _
  // Predicated region
  $region26: #{decoder_forward.1} parent=0 // pred_check
    _
  $region27: #{decoder_forward.1} parent=0 // pred_check_branch
    %30 = sbr.rel (0) target = $region29
  $region28: #{decoder_forward.1} parent=0 // pred_region
    _
  $region29: #{decoder_forward.1} parent=0 // pred_fallthru
    _
  // Predicated region
  $region30: #{decoder_forward.1} parent=0 // pred_check
    _
  $region31: #{decoder_forward.1} parent=0 // pred_check_branch
    %32 = sbr.rel (0) target = $region33
  $region32: #{decoder_forward.1} parent=0 // pred_region
    _
  $region33: #{decoder_forward.1} parent=0 // pred_fallthru
    _
  // Predicated region
  $region34: #{decoder_forward.1} parent=0 // pred_check
    _
  $region35: #{decoder_forward.1} parent=0 // pred_check_branch
    %34 = sbr.rel (0) target = $region37
  $region36: #{decoder_forward.1} parent=0 // pred_region
    _
  $region37: #{decoder_forward.1} parent=0 // pred_fallthru
    _
  // Predicated region
  $region38: #{decoder_forward.1} parent=0 // pred_check
    _
  $region39: #{decoder_forward.1} parent=0 // pred_check_branch
    %36 = sbr.rel (0) target = $region41
  $region40: #{decoder_forward.1} parent=0 // pred_region
    _
  $region41: #{decoder_forward.1} parent=0 // pred_fallthru
    _
  // Predicated region
  $region42: #{decoder_forward.1} parent=0 // pred_check
    _
  $region43: #{decoder_forward.1} parent=0 // pred_check_branch
    %38 = sbr.rel (0) target = $region45
  $region44: #{decoder_forward.1} parent=0 // pred_region
    _
  $region45: #{decoder_forward.1} parent=0 // pred_fallthru
    _
  // Predicated region
  $region46: #{decoder_forward.1} parent=0 // pred_check
    _
  $region47: #{decoder_forward.1} parent=0 // pred_check_branch
    %40 = sbr.rel (0) target = $region49
  $region48: #{decoder_forward.1} parent=0 // pred_region
    _
  $region49: #{decoder_forward.1} parent=0 // pred_fallthru
    _
  %41 = vst [vmem:[#allocation2] sm:$0xff] 0.0
  %42 = vst [vmem:[#allocation2 + $0x8] sm:$0xff] 0.0
  %43 = vst [vmem:[#allocation2 + $0x10] sm:$0xff] 0.0
  %44 = vst [vmem:[#allocation2 + $0x18] sm:$0xff] 0.0
  %vm45 = vcmask 277504
  %46 = vst.msk [vmem:[#allocation2 + $0x20] sm:$0xff] %vm45, 0.0
  %v47 = vld [vmem:[%s1] sm:$0xff]
  %v48 = vld [vmem:[%s1 + $0x8] sm:$0xff]
  %v51 = vcombine.high %v47, %v47
  %v52 = vcombine.high %v48, %v48
  %53 = vrot.lane.b32.xlu0 %v47, 17
  %v54 = vpop.permute.xlu0 %53
  %55 = vrot.lane.b32.xlu0 %v51, 17
  %v56 = vpop.permute.xlu0 %55
  %57 = vrot.lane.b32.xlu0 %v48, 17
  %v58 = vpop.permute.xlu0 %57
  %59 = vrot.lane.b32.xlu0 %v52, 17
  %v60 = vpop.permute.xlu0 %59
  %vm61 = vcmask 138240
  %v62 = vsel %vm61, %v54, %v56
  %v63 = vsel %vm61, %v56, %v58
  %v64 = vsel %vm61, %v58, %v60
  %vm70 = vcmask 1043592
  %71 = vst.msk [vmem:[#allocation2] sm:$0xf] %vm70, %v54
  %72 = vst [vmem:[#allocation2 + $0x8] sm:$0xf] %v62
  %73 = vst [vmem:[#allocation2 + $0x10] sm:$0xf] %v63
  %74 = vst [vmem:[#allocation2 + $0x18] sm:$0xf] %v64
  %vm75 = vcmask 134144
  %76 = vst.msk [vmem:[#allocation2 + $0x20] sm:$0xf] %vm75, %v60
  %v77 = vld [vmem:[%s2] sm:$0xff]
  %v78 = vld [vmem:[%s2 + $0x8] sm:$0xff]
  %v81 = vcombine.low %v77, %v77
  %v82 = vcombine.low %v78, %v78
  %83 = vrot.lane.b32.xlu0 %v81, 17
  %v84 = vpop.permute.xlu0 %83
  %85 = vrot.lane.b32.xlu0 %v77, 17
  %v86 = vpop.permute.xlu0 %85
  %87 = vrot.lane.b32.xlu0 %v82, 17
  %v88 = vpop.permute.xlu0 %87
  %89 = vrot.lane.b32.xlu0 %v78, 17
  %v90 = vpop.permute.xlu0 %89
  %v91 = vsel %vm61, %v84, %v86
  %v92 = vsel %vm61, %v86, %v88
  %v93 = vsel %vm61, %v88, %v90
  %vm99 = vcmask 1047692
  %100 = vst.msk [vmem:[#allocation2] sm:$0xf0] %vm99, %v84
  %101 = vst [vmem:[#allocation2 + $0x8] sm:$0xf0] %v91
  %102 = vst [vmem:[#allocation2 + $0x10] sm:$0xf0] %v92
  %103 = vst [vmem:[#allocation2 + $0x18] sm:$0xf0] %v93
  %vm104 = vcmask 138244
  %105 = vst.msk [vmem:[#allocation2 + $0x20] sm:$0xf0] %vm104, %v90
  %v106 = vld [vmem:[%s0] ss:$8 sm:$0xf]
  %s107 = scalar_lea.vmem %s0, 1
  %v108 = vld [vmem:[%s107] ss:$8 sm:$0xf]
  %s109 = scalar_lea.vmem %s0, 2
  %v110 = vld [vmem:[%s109] ss:$8 sm:$0xf]
  %s111 = scalar_lea.vmem %s0, 3
  %v112 = vld [vmem:[%s111] ss:$8 sm:$0xf]
  %s113 = scalar_lea.vmem %s0, 5
  %v114 = vld [vmem:[%s113] ss:$8 sm:$0xf]
  %s115 = scalar_lea.vmem %s0, 6
  %v116 = vld [vmem:[%s115] ss:$8 sm:$0xf]
  %s117 = scalar_lea.vmem %s0, 7
  %v118 = vld [vmem:[%s117] ss:$8 sm:$0xf]
  %s119 = scalar_lea.vmem %s0, 32
  %v120 = vld [vmem:[%s119] ss:$8 sm:$0xf]
  %v121 = vld [vmem:[#allocation2] sm:$0xff]
  %v122 = vld [vmem:[#allocation2 + $0x8] sm:$0xff]
  %v123 = vld [vmem:[#allocation2 + $0x10] sm:$0xff]
  %v124 = vld [vmem:[#allocation2 + $0x18] sm:$0xff]
  %v126 = vlaneseq
  %v127 = vshrl.u32 %v126, 7
  %v128 = vsub.s32 0, %v127
  %v129 = vrot.slane %v106, %v128
  %v130 = vlaneseq
  %v131 = vshrl.u32 %v130, 7
  %v132 = vsub.s32 1, %v131
  %v133 = vrot.slane %v106, %v132
  %v134 = vlaneseq
  %v135 = vshrl.u32 %v134, 7
  %v136 = vsub.s32 2, %v135
  %v137 = vrot.slane %v106, %v136
  %v138 = vlaneseq
  %v139 = vshrl.u32 %v138, 7
  %v140 = vsub.s32 3, %v139
  %v141 = vrot.slane %v106, %v140
  %v146 = vmul.f32 %v121, %v129
  %v147 = vmul.f32 %v122, %v133
  %v148 = vmul.f32 %v123, %v137
  %v149 = vmul.f32 %v124, %v141
  %v150 = vld [vmem:[#allocation2 + $0x20] sm:$0xff]
  %v152 = vlaneseq
  %v153 = vshrl.u32 %v152, 7
  %v154 = vsub.s32 0, %v153
  %v155 = vrot.slane %v108, %v154
  %v156 = vlaneseq
  %v157 = vshrl.u32 %v156, 7
  %v158 = vsub.s32 1, %v157
  %v159 = vrot.slane %v108, %v158
  %v160 = vlaneseq
  %v161 = vshrl.u32 %v160, 7
  %v162 = vsub.s32 2, %v161
  %v163 = vrot.slane %v108, %v162
  %v164 = vlaneseq
  %v165 = vshrl.u32 %v164, 7
  %v166 = vsub.s32 3, %v165
  %v167 = vrot.slane %v108, %v166
  %168 = vrot.lane.b32.xlu0 %v155, 1
  %v169 = vpop.permute.xlu0 %168
  %170 = vrot.lane.b32.xlu0 %v159, 1
  %v171 = vpop.permute.xlu0 %170
  %172 = vrot.lane.b32.xlu0 %v163, 1
  %v173 = vpop.permute.xlu0 %172
  %174 = vrot.lane.b32.xlu0 %v167, 1
  %v175 = vpop.permute.xlu0 %174
  %vm176 = vcmask 7168
  %v177 = vsel %vm176, %v169, %v171
  %v178 = vsel %vm176, %v171, %v173
  %v179 = vsel %vm176, %v173, %v175
  %v185 = vmul.f32 %v121, %v169
  %v186 = vmul.f32 %v122, %v177
  %v187 = vmul.f32 %v123, %v178
  %v188 = vmul.f32 %v124, %v179
  %v189 = vmul.f32 %v150, %v175
  %v191 = vlaneseq
  %v192 = vshrl.u32 %v191, 7
  %v193 = vsub.s32 0, %v192
  %v194 = vrot.slane %v110, %v193
  %v195 = vlaneseq
  %v196 = vshrl.u32 %v195, 7
  %v197 = vsub.s32 1, %v196
  %v198 = vrot.slane %v110, %v197
  %v199 = vlaneseq
  %v200 = vshrl.u32 %v199, 7
  %v201 = vsub.s32 2, %v200
  %v202 = vrot.slane %v110, %v201
  %v203 = vlaneseq
  %v204 = vshrl.u32 %v203, 7
  %v205 = vsub.s32 3, %v204
  %v206 = vrot.slane %v110, %v205
  %207 = vrot.lane.b32.xlu0 %v194, 2
  %v208 = vpop.permute.xlu0 %207
  %209 = vrot.lane.b32.xlu0 %v198, 2
  %v210 = vpop.permute.xlu0 %209
  %211 = vrot.lane.b32.xlu0 %v202, 2
  %v212 = vpop.permute.xlu0 %211
  %213 = vrot.lane.b32.xlu0 %v206, 2
  %v214 = vpop.permute.xlu0 %213
  %vm215 = vcmask 15360
  %v216 = vsel %vm215, %v208, %v210
  %v217 = vsel %vm215, %v210, %v212
  %v218 = vsel %vm215, %v212, %v214
  %v224 = vmul.f32 %v121, %v208
  %v225 = vmul.f32 %v122, %v216
  %v226 = vmul.f32 %v123, %v217
  %v227 = vmul.f32 %v124, %v218
  %v228 = vmul.f32 %v150, %v214
  %v230 = vlaneseq
  %v231 = vshrl.u32 %v230, 7
  %v232 = vsub.s32 0, %v231
  %v233 = vrot.slane %v112, %v232
  %v234 = vlaneseq
  %v235 = vshrl.u32 %v234, 7
  %v236 = vsub.s32 1, %v235
  %v237 = vrot.slane %v112, %v236
  %v238 = vlaneseq
  %v239 = vshrl.u32 %v238, 7
  %v240 = vsub.s32 2, %v239
  %v241 = vrot.slane %v112, %v240
  %v242 = vlaneseq
  %v243 = vshrl.u32 %v242, 7
  %v244 = vsub.s32 3, %v243
  %v245 = vrot.slane %v112, %v244
  %246 = vrot.lane.b32.xlu0 %v233, 16
  %v247 = vpop.permute.xlu0 %246
  %248 = vrot.lane.b32.xlu0 %v237, 16
  %v249 = vpop.permute.xlu0 %248
  %250 = vrot.lane.b32.xlu0 %v241, 16
  %v251 = vpop.permute.xlu0 %250
  %252 = vrot.lane.b32.xlu0 %v245, 16
  %v253 = vpop.permute.xlu0 %252
  %vm254 = vcmask 130048
  %v255 = vsel %vm254, %v247, %v249
  %v256 = vsel %vm254, %v249, %v251
  %v257 = vsel %vm254, %v251, %v253
  %v263 = vmul.f32 %v121, %v247
  %v264 = vmul.f32 %v122, %v255
  %v265 = vmul.f32 %v123, %v256
  %v266 = vmul.f32 %v124, %v257
  %v267 = vmul.f32 %v150, %v253
  %v269 = vlaneseq
  %v270 = vshrl.u32 %v269, 7
  %v271 = vsub.s32 0, %v270
  %v272 = vrot.slane %v114, %v271
  %v273 = vlaneseq
  %v274 = vshrl.u32 %v273, 7
  %v275 = vsub.s32 1, %v274
  %v276 = vrot.slane %v114, %v275
  %v277 = vlaneseq
  %v278 = vshrl.u32 %v277, 7
  %v279 = vsub.s32 2, %v278
  %v280 = vrot.slane %v114, %v279
  %v281 = vlaneseq
  %v282 = vshrl.u32 %v281, 7
  %v283 = vsub.s32 3, %v282
  %v284 = vrot.slane %v114, %v283
  %285 = vrot.lane.b32.xlu0 %v272, 18
  %v286 = vpop.permute.xlu0 %285
  %287 = vrot.lane.b32.xlu0 %v276, 18
  %v288 = vpop.permute.xlu0 %287
  %289 = vrot.lane.b32.xlu0 %v280, 18
  %v290 = vpop.permute.xlu0 %289
  %291 = vrot.lane.b32.xlu0 %v284, 18
  %v292 = vpop.permute.xlu0 %291
  %vm293 = vcmask 146432
  %v294 = vsel %vm293, %v286, %v288
  %v295 = vsel %vm293, %v288, %v290
  %v296 = vsel %vm293, %v290, %v292
  %v302 = vmul.f32 %v121, %v286
  %v303 = vmul.f32 %v122, %v294
  %v304 = vmul.f32 %v123, %v295
  %v305 = vmul.f32 %v124, %v296
  %v306 = vmul.f32 %v150, %v292
  %v308 = vlaneseq
  %v309 = vshrl.u32 %v308, 7
  %v310 = vsub.s32 0, %v309
  %v311 = vrot.slane %v116, %v310
  %v312 = vlaneseq
  %v313 = vshrl.u32 %v312, 7
  %v314 = vsub.s32 1, %v313
  %v315 = vrot.slane %v116, %v314
  %v316 = vlaneseq
  %v317 = vshrl.u32 %v316, 7
  %v318 = vsub.s32 2, %v317
  %v319 = vrot.slane %v116, %v318
  %v320 = vlaneseq
  %v321 = vshrl.u32 %v320, 7
  %v322 = vsub.s32 3, %v321
  %v323 = vrot.slane %v116, %v322
  %324 = vrot.lane.b32.xlu0 %v311, 32
  %v325 = vpop.permute.xlu0 %324
  %326 = vrot.lane.b32.xlu0 %v315, 32
  %v327 = vpop.permute.xlu0 %326
  %328 = vrot.lane.b32.xlu0 %v319, 32
  %v329 = vpop.permute.xlu0 %328
  %330 = vrot.lane.b32.xlu0 %v323, 32
  %v331 = vpop.permute.xlu0 %330
  %vm332 = vcmask 261120
  %v333 = vsel %vm332, %v325, %v327
  %v334 = vsel %vm332, %v327, %v329
  %v335 = vsel %vm332, %v329, %v331
  %v341 = vmul.f32 %v121, %v325
  %v342 = vmul.f32 %v122, %v333
  %v343 = vmul.f32 %v123, %v334
  %v344 = vmul.f32 %v124, %v335
  %v345 = vmul.f32 %v150, %v331
  %v347 = vlaneseq
  %v348 = vshrl.u32 %v347, 7
  %v349 = vsub.s32 0, %v348
  %v350 = vrot.slane %v118, %v349
  %v351 = vlaneseq
  %v352 = vshrl.u32 %v351, 7
  %v353 = vsub.s32 1, %v352
  %v354 = vrot.slane %v118, %v353
  %v355 = vlaneseq
  %v356 = vshrl.u32 %v355, 7
  %v357 = vsub.s32 2, %v356
  %v358 = vrot.slane %v118, %v357
  %v359 = vlaneseq
  %v360 = vshrl.u32 %v359, 7
  %v361 = vsub.s32 3, %v360
  %v362 = vrot.slane %v118, %v361
  %363 = vrot.lane.b32.xlu0 %v350, 33
  %v364 = vpop.permute.xlu0 %363
  %365 = vrot.lane.b32.xlu0 %v354, 33
  %v366 = vpop.permute.xlu0 %365
  %367 = vrot.lane.b32.xlu0 %v358, 33
  %v368 = vpop.permute.xlu0 %367
  %369 = vrot.lane.b32.xlu0 %v362, 33
  %v370 = vpop.permute.xlu0 %369
  %vm371 = vcmask 269312
  %v372 = vsel %vm371, %v364, %v366
  %v373 = vsel %vm371, %v366, %v368
  %v374 = vsel %vm371, %v368, %v370
  %v380 = vmul.f32 %v121, %v364
  %v381 = vmul.f32 %v122, %v372
  %v382 = vmul.f32 %v123, %v373
  %v383 = vmul.f32 %v124, %v374
  %v384 = vmul.f32 %v150, %v370
  %v386 = vlaneseq
  %v387 = vshrl.u32 %v386, 7
  %v388 = vsub.s32 0, %v387
  %v389 = vrot.slane %v120, %v388
  %v390 = vlaneseq
  %v391 = vshrl.u32 %v390, 7
  %v392 = vsub.s32 1, %v391
  %v393 = vrot.slane %v120, %v392
  %v394 = vlaneseq
  %v395 = vshrl.u32 %v394, 7
  %v396 = vsub.s32 2, %v395
  %v397 = vrot.slane %v120, %v396
  %v398 = vlaneseq
  %v399 = vshrl.u32 %v398, 7
  %v400 = vsub.s32 3, %v399
  %v401 = vrot.slane %v120, %v400
  %402 = vrot.lane.b32.xlu0 %v389, 34
  %v403 = vpop.permute.xlu0 %402
  %404 = vrot.lane.b32.xlu0 %v393, 34
  %v405 = vpop.permute.xlu0 %404
  %406 = vrot.lane.b32.xlu0 %v397, 34
  %v407 = vpop.permute.xlu0 %406
  %408 = vrot.lane.b32.xlu0 %v401, 34
  %v409 = vpop.permute.xlu0 %408
  %v410 = vsel %vm45, %v403, %v405
  %v411 = vsel %vm45, %v405, %v407
  %v412 = vsel %vm45, %v407, %v409
  %v418 = vmul.f32 %v121, %v403
  %v419 = vmul.f32 %v122, %v410
  %v420 = vmul.f32 %v123, %v411
  %v421 = vmul.f32 %v124, %v412
  %v422 = vmul.f32 %v150, %v409
  %428 = vrot.lane.b32.xlu0 %v185, 127
  %v429 = vpop.permute.xlu0 %428
  %430 = vrot.lane.b32.xlu0 %v186, 127
  %v431 = vpop.permute.xlu0 %430
  %432 = vrot.lane.b32.xlu0 %v187, 127
  %v433 = vpop.permute.xlu0 %432
  %434 = vrot.lane.b32.xlu0 %v188, 127
  %v435 = vpop.permute.xlu0 %434
  %436 = vrot.lane.b32.xlu0 %v189, 127
  %v437 = vpop.permute.xlu0 %436
  %vm438 = vcmask 1039360
  %v439 = vsel %vm438, %v429, %v431
  %v440 = vsel %vm438, %v431, %v433
  %v441 = vsel %vm438, %v433, %v435
  %v442 = vsel %vm438, %v435, %v437
  %452 = vrot.lane.b32.xlu0 %v224, 126
  %v453 = vpop.permute.xlu0 %452
  %454 = vrot.lane.b32.xlu0 %v225, 126
  %v455 = vpop.permute.xlu0 %454
  %456 = vrot.lane.b32.xlu0 %v226, 126
  %v457 = vpop.permute.xlu0 %456
  %458 = vrot.lane.b32.xlu0 %v227, 126
  %v459 = vpop.permute.xlu0 %458
  %460 = vrot.lane.b32.xlu0 %v228, 126
  %v461 = vpop.permute.xlu0 %460
  %vm462 = vcmask 1031168
  %v463 = vsel %vm462, %v453, %v455
  %v464 = vsel %vm462, %v455, %v457
  %v465 = vsel %vm462, %v457, %v459
  %v466 = vsel %vm462, %v459, %v461
  %476 = vrot.lane.b32.xlu0 %v263, 112
  %v477 = vpop.permute.xlu0 %476
  %478 = vrot.lane.b32.xlu0 %v264, 112
  %v479 = vpop.permute.xlu0 %478
  %480 = vrot.lane.b32.xlu0 %v265, 112
  %v481 = vpop.permute.xlu0 %480
  %482 = vrot.lane.b32.xlu0 %v266, 112
  %v483 = vpop.permute.xlu0 %482
  %484 = vrot.lane.b32.xlu0 %v267, 112
  %v485 = vpop.permute.xlu0 %484
  %vm486 = vcmask 916480
  %v487 = vsel %vm486, %v477, %v479
  %v488 = vsel %vm486, %v479, %v481
  %v489 = vsel %vm486, %v481, %v483
  %v490 = vsel %vm486, %v483, %v485
  %500 = vrot.lane.b32.xlu0 %v121, 111
  %v501 = vpop.permute.xlu0 %500
  %502 = vrot.lane.b32.xlu0 %v122, 111
  %v503 = vpop.permute.xlu0 %502
  %504 = vrot.lane.b32.xlu0 %v123, 111
  %v505 = vpop.permute.xlu0 %504
  %506 = vrot.lane.b32.xlu0 %v124, 111
  %v507 = vpop.permute.xlu0 %506
  %508 = vrot.lane.b32.xlu0 %v150, 111
  %v509 = vpop.permute.xlu0 %508
  %vm510 = vcmask 908288
  %v511 = vsel %vm510, %v501, %v503
  %v512 = vsel %vm510, %v503, %v505
  %v513 = vsel %vm510, %v505, %v507
  %v514 = vsel %vm510, %v507, %v509
  %524 = vrot.lane.b32.xlu0 %v302, 110
  %v525 = vpop.permute.xlu0 %524
  %526 = vrot.lane.b32.xlu0 %v303, 110
  %v527 = vpop.permute.xlu0 %526
  %528 = vrot.lane.b32.xlu0 %v304, 110
  %v529 = vpop.permute.xlu0 %528
  %530 = vrot.lane.b32.xlu0 %v305, 110
  %v531 = vpop.permute.xlu0 %530
  %532 = vrot.lane.b32.xlu0 %v306, 110
  %v533 = vpop.permute.xlu0 %532
  %vm534 = vcmask 900096
  %v535 = vsel %vm534, %v525, %v527
  %v536 = vsel %vm534, %v527, %v529
  %v537 = vsel %vm534, %v529, %v531
  %v538 = vsel %vm534, %v531, %v533
  %548 = vrot.lane.b32.xlu0 %v341, 96
  %v549 = vpop.permute.xlu0 %548
  %550 = vrot.lane.b32.xlu0 %v342, 96
  %v551 = vpop.permute.xlu0 %550
  %552 = vrot.lane.b32.xlu0 %v343, 96
  %v553 = vpop.permute.xlu0 %552
  %554 = vrot.lane.b32.xlu0 %v344, 96
  %v555 = vpop.permute.xlu0 %554
  %556 = vrot.lane.b32.xlu0 %v345, 96
  %v557 = vpop.permute.xlu0 %556
  %vm558 = vcmask 785408
  %v559 = vsel %vm558, %v549, %v551
  %v560 = vsel %vm558, %v551, %v553
  %v561 = vsel %vm558, %v553, %v555
  %v562 = vsel %vm558, %v555, %v557
  %572 = vrot.lane.b32.xlu0 %v380, 95
  %v573 = vpop.permute.xlu0 %572
  %574 = vrot.lane.b32.xlu0 %v381, 95
  %v575 = vpop.permute.xlu0 %574
  %576 = vrot.lane.b32.xlu0 %v382, 95
  %v577 = vpop.permute.xlu0 %576
  %578 = vrot.lane.b32.xlu0 %v383, 95
  %v579 = vpop.permute.xlu0 %578
  %580 = vrot.lane.b32.xlu0 %v384, 95
  %v581 = vpop.permute.xlu0 %580
  %vm582 = vcmask 777216
  %v583 = vsel %vm582, %v573, %v575
  %v584 = vsel %vm582, %v575, %v577
  %v585 = vsel %vm582, %v577, %v579
  %v586 = vsel %vm582, %v579, %v581
  %596 = vrot.lane.b32.xlu0 %v418, 94
  %v597 = vpop.permute.xlu0 %596
  %598 = vrot.lane.b32.xlu0 %v419, 94
  %v599 = vpop.permute.xlu0 %598
  %600 = vrot.lane.b32.xlu0 %v420, 94
  %v601 = vpop.permute.xlu0 %600
  %602 = vrot.lane.b32.xlu0 %v421, 94
  %v603 = vpop.permute.xlu0 %602
  %604 = vrot.lane.b32.xlu0 %v422, 94
  %v605 = vpop.permute.xlu0 %604
  %vm606 = vcmask 769024
  %v607 = vsel %vm606, %v597, %v599
  %v608 = vsel %vm606, %v599, %v601
  %v609 = vsel %vm606, %v601, %v603
  %v610 = vsel %vm606, %v603, %v605
  %v615 = vld [vmem:[%s3] sm:$0xff]
  %vm616 = vcmask 588800
  %v618 = vsel %vm616, %v615, 0
  %620 = vmatprep.subr.mxu0 %v147
  %621 = vmatpush1.msra.mxu0 %v146
  %622 = vmatprep.subr.mxu0 %v440
  %623 = vmatpush1.msra.mxu0 %v439
  %624 = vmatprep.subr.mxu0 %v464
  %625 = vmatpush1.msra.mxu0 %v463
  %626 = vmatprep.subr.mxu0 %v488
  %627 = vmatpush1.msra.mxu0 %v487
  %628 = vmatprep.subr.mxu0 %v512
  %629 = vmatpush1.msra.mxu0 %v511
  %630 = vmatprep.subr.mxu0 %v536
  %631 = vmatpush1.msra.mxu0 %v535
  %632 = vmatprep.subr.mxu0 %v560
  %633 = vmatpush1.msra.mxu0 %v559
  %634 = vmatprep.subr.mxu0 %v584
  %635 = vmatpush1.msra.mxu0 %v583
  %636 = vmatprep.subr.mxu0 %v608
  %637 = vmatpush1.msra.mxu0 %v607
  %638 = vmatprep.subr.mxu0 0.0
  %639 = vmatpush1.msra.mxu0 0.0
  %640 = vmatprep.subr.mxu0 0.0
  %641 = vmatpush1.msra.mxu0 0.0
  %642 = vmatprep.subr.mxu0 0.0
  %643 = vmatpush1.msra.mxu0 0.0
  %644 = vmatprep.subr.mxu0 0.0
  %645 = vmatpush1.msra.mxu0 0.0
  %646 = vmatprep.subr.mxu0 0.0
  %647 = vmatpush1.msra.mxu0 0.0
  %648 = vmatprep.subr.mxu0 0.0
  %649 = vmatpush1.msra.mxu0 0.0
  %650 = vmatprep.subr.mxu0 0.0
  %651 = vmatpush1.msra.mxu0 0.0
  %652 = vmatprep.subr.mxu0 0.0
  %653 = vmatpush1.msra.mxu0 0.0
  %654 = vmatprep.subr.mxu0 0.0
  %655 = vmatpush1.msra.mxu0 0.0
  %656 = vmatprep.subr.mxu0 0.0
  %657 = vmatpush1.msra.mxu0 0.0
  %658 = vmatprep.subr.mxu0 0.0
  %659 = vmatpush1.msra.mxu0 0.0
  %660 = vmatprep.subr.mxu0 0.0
  %661 = vmatpush1.msra.mxu0 0.0
  %662 = vmatprep.subr.mxu0 0.0
  %663 = vmatpush1.msra.mxu0 0.0
  %664 = vmatprep.subr.mxu0 0.0
  %665 = vmatpush1.msra.mxu0 0.0
  %666 = vmatprep.subr.mxu0 0.0
  %667 = vmatpush1.msra.mxu0 0.0
  %668 = vmatprep.subr.mxu0 0.0
  %669 = vmatpush1.msra.mxu0 0.0
  %670 = vmatprep.subr.mxu0 0.0
  %671 = vmatpush1.msra.mxu0 0.0
  %672 = vmatprep.subr.mxu0 0.0
  %673 = vmatpush1.msra.mxu0 0.0
  %674 = vmatprep.subr.mxu0 0.0
  %675 = vmatpush1.msra.mxu0 0.0
  %676 = vmatprep.subr.mxu0 0.0
  %677 = vmatpush1.msra.mxu0 0.0
  %678 = vmatprep.subr.mxu0 0.0
  %679 = vmatpush1.msra.mxu0 0.0
  %680 = vmatprep.subr.mxu0 0.0
  %681 = vmatpush1.msra.mxu0 0.0
  %682 = vmatprep.subr.mxu0 0.0
  %683 = vmatpush1.msra.mxu0 0.0
  %684 = vmatprep.mubr.f32.mxu0 0.0
  %685 = vmatmul.mubr.f32.gmra.mrb[0].mxu0 %v618
  %v686 = vpop.f32.mrb[0].mxu0
  %v687 = vadd.f32 0.0, %v686
  %v688 = vpop.f32.mrb[0].mxu0
  %v689 = vadd.f32 0.0, %v688
  %690 = vdwg.mxu0
  %691 = vmatprep.subr.mxu0 %v149
  %692 = vmatpush1.msra.mxu0 %v148
  %693 = vmatprep.subr.mxu0 %v442
  %694 = vmatpush1.msra.mxu0 %v441
  %695 = vmatprep.subr.mxu0 %v466
  %696 = vmatpush1.msra.mxu0 %v465
  %697 = vmatprep.subr.mxu0 %v490
  %698 = vmatpush1.msra.mxu0 %v489
  %699 = vmatprep.subr.mxu0 %v514
  %700 = vmatpush1.msra.mxu0 %v513
  %701 = vmatprep.subr.mxu0 %v538
  %702 = vmatpush1.msra.mxu0 %v537
  %703 = vmatprep.subr.mxu0 %v562
  %704 = vmatpush1.msra.mxu0 %v561
  %705 = vmatprep.subr.mxu0 %v586
  %706 = vmatpush1.msra.mxu0 %v585
  %707 = vmatprep.subr.mxu0 %v610
  %708 = vmatpush1.msra.mxu0 %v609
  %709 = vmatprep.subr.mxu0 0.0
  %710 = vmatpush1.msra.mxu0 0.0
  %711 = vmatprep.subr.mxu0 0.0
  %712 = vmatpush1.msra.mxu0 0.0
  %713 = vmatprep.subr.mxu0 0.0
  %714 = vmatpush1.msra.mxu0 0.0
  %715 = vmatprep.subr.mxu0 0.0
  %716 = vmatpush1.msra.mxu0 0.0
  %717 = vmatprep.subr.mxu0 0.0
  %718 = vmatpush1.msra.mxu0 0.0
  %719 = vmatprep.subr.mxu0 0.0
  %720 = vmatpush1.msra.mxu0 0.0
  %721 = vmatprep.subr.mxu0 0.0
  %722 = vmatpush1.msra.mxu0 0.0
  %723 = vmatprep.subr.mxu0 0.0
  %724 = vmatpush1.msra.mxu0 0.0
  %725 = vmatprep.subr.mxu0 0.0
  %726 = vmatpush1.msra.mxu0 0.0
  %727 = vmatprep.subr.mxu0 0.0
  %728 = vmatpush1.msra.mxu0 0.0
  %729 = vmatprep.subr.mxu0 0.0
  %730 = vmatpush1.msra.mxu0 0.0
  %731 = vmatprep.subr.mxu0 0.0
  %732 = vmatpush1.msra.mxu0 0.0
  %733 = vmatprep.subr.mxu0 0.0
  %734 = vmatpush1.msra.mxu0 0.0
  %735 = vmatprep.subr.mxu0 0.0
  %736 = vmatpush1.msra.mxu0 0.0
  %737 = vmatprep.subr.mxu0 0.0
  %738 = vmatpush1.msra.mxu0 0.0
  %739 = vmatprep.subr.mxu0 0.0
  %740 = vmatpush1.msra.mxu0 0.0
  %741 = vmatprep.subr.mxu0 0.0
  %742 = vmatpush1.msra.mxu0 0.0
  %743 = vmatprep.subr.mxu0 0.0
  %744 = vmatpush1.msra.mxu0 0.0
  %745 = vmatprep.subr.mxu0 0.0
  %746 = vmatpush1.msra.mxu0 0.0
  %747 = vmatprep.subr.mxu0 0.0
  %748 = vmatpush1.msra.mxu0 0.0
  %749 = vmatprep.subr.mxu0 0.0
  %750 = vmatpush1.msra.mxu0 0.0
  %751 = vmatprep.subr.mxu0 0.0
  %752 = vmatpush1.msra.mxu0 0.0
  %753 = vmatprep.subr.mxu0 0.0
  %754 = vmatpush1.msra.mxu0 0.0
  %755 = vmatprep.mubr.f32.mxu0 0.0
  %756 = vmatmul.mubr.f32.gmra.mrb[0].mxu0 %v618
  %v757 = vpop.f32.mrb[0].mxu0
  %v758 = vadd.f32 0.0, %v757
  %v759 = vpop.f32.mrb[0].mxu0
  %v760 = vadd.f32 0.0, %v759
  %761 = vdwg.mxu0
  %v762 = vadd.f32 %v687, %v689
  %v763 = vadd.f32 %v762, %v758
  %v764 = vadd.f32 %v763, %v760
  %765 = vadd.xlane.f32.xlu0 %v764
  %v766 = vpop.xlane.xlu0 %765
  %v767 = vmul.f32 %v766, 0.001953125
  %v768 = vsub.f32 %v687, %v767
  %v769 = vsub.f32 %v689, %v767
  %v770 = vsub.f32 %v758, %v767
  %v771 = vsub.f32 %v760, %v767
  %v772 = vmul.f32 %v768, %v768
  %v773 = vmul.f32 %v769, %v769
  %v774 = vmul.f32 %v770, %v770
  %v775 = vmul.f32 %v771, %v771
  %v776 = vadd.f32 %v772, %v773
  %v777 = vadd.f32 %v776, %v774
  %v778 = vadd.f32 %v777, %v775
  %779 = vadd.xlane.f32.xlu0 %v778
  %v780 = vpop.xlane.xlu0 %779
  %v781 = vmul.f32 %v780, 0.001953125
  %v782 = vld [vmem:[%s4] sm:$0xff]
  %v783 = vadd.f32 %v781, 1e-05
  %v784 = vrsqrt.pop %v783
  %v785 = vmul.f32 %v782, %v784
  %787 = vset.pattern.permute.xlu0 0
  %788 = vperm.xlu0 %787, %v785
  %v789 = vpop.permute.xlu0 %788
  %v791 = vmul.f32 %v768, %v789
  %v792 = vmul.f32 %v769, %v789
  %v793 = vmul.f32 %v770, %v789
  %v794 = vmul.f32 %v771, %v789
  %v795 = vld [vmem:[%s5] sm:$0xff]
  %797 = vset.pattern.permute.xlu0 0
  %798 = vperm.xlu0 %797, %v795
  %v799 = vpop.permute.xlu0 %798
  %v801 = vadd.f32 %v791, %v799
  %v802 = vadd.f32 %v792, %v799
  %v803 = vadd.f32 %v793, %v799
  %v804 = vadd.f32 %v794, %v799
  %v805 = vmax.f32 %v801, 0.0
  %v806 = vmax.f32 %v802, 0.0
  %v807 = vmax.f32 %v803, 0.0
  %v808 = vmax.f32 %v804, 0.0
  %813 = vrot.lane.b32.xlu0 %v805, 17
  %v814 = vpop.permute.xlu0 %813
  %815 = vrot.lane.b32.xlu0 %v806, 17
  %v816 = vpop.permute.xlu0 %815
  %817 = vrot.lane.b32.xlu0 %v807, 17
  %v818 = vpop.permute.xlu0 %817
  %819 = vrot.lane.b32.xlu0 %v808, 17
  %v820 = vpop.permute.xlu0 %819
  %v821 = vsel %vm61, %v814, %v816
  %v822 = vsel %vm61, %v816, %v818
  %v823 = vsel %vm61, %v818, %v820
  %vm829 = vcmask 1047688
  %830 = vst.msk [vmem:[#allocation2] sm:$0xff] %vm829, %v814
  %831 = vst [vmem:[#allocation2 + $0x8] sm:$0xff] %v821
  %832 = vst [vmem:[#allocation2 + $0x10] sm:$0xff] %v822
  %833 = vst [vmem:[#allocation2 + $0x18] sm:$0xff] %v823
  %834 = vst.msk [vmem:[#allocation2 + $0x20] sm:$0xff] %vm61, %v820
  %v835 = vld [vmem:[#allocation2] sm:$0xff]
  %v836 = vld [vmem:[#allocation2 + $0x8] sm:$0xff]
  %v837 = vld [vmem:[#allocation2 + $0x10] sm:$0xff]
  %v838 = vld [vmem:[#allocation2 + $0x18] sm:$0xff]
  %v839 = vmul.f32 %v835, %v129
  %v840 = vmul.f32 %v836, %v133
  %v841 = vmul.f32 %v837, %v137
  %v842 = vmul.f32 %v838, %v141
  %v843 = vld [vmem:[#allocation2 + $0x20] sm:$0xff]
  %v844 = vmul.f32 %v835, %v169
  %v845 = vmul.f32 %v836, %v177
  %v846 = vmul.f32 %v837, %v178
  %v847 = vmul.f32 %v838, %v179
  %v848 = vmul.f32 %v843, %v175
  %v849 = vmul.f32 %v835, %v208
  %v850 = vmul.f32 %v836, %v216
  %v851 = vmul.f32 %v837, %v217
  %v852 = vmul.f32 %v838, %v218
  %v853 = vmul.f32 %v843, %v214
  %v854 = vmul.f32 %v835, %v247
  %v855 = vmul.f32 %v836, %v255
  %v856 = vmul.f32 %v837, %v256
  %v857 = vmul.f32 %v838, %v257
  %v858 = vmul.f32 %v843, %v253
  %v859 = vmul.f32 %v835, %v286
  %v860 = vmul.f32 %v836, %v294
  %v861 = vmul.f32 %v837, %v295
  %v862 = vmul.f32 %v838, %v296
  %v863 = vmul.f32 %v843, %v292
  %v864 = vmul.f32 %v835, %v325
  %v865 = vmul.f32 %v836, %v333
  %v866 = vmul.f32 %v837, %v334
  %v867 = vmul.f32 %v838, %v335
  %v868 = vmul.f32 %v843, %v331
  %v869 = vmul.f32 %v835, %v364
  %v870 = vmul.f32 %v836, %v372
  %v871 = vmul.f32 %v837, %v373
  %v872 = vmul.f32 %v838, %v374
  %v873 = vmul.f32 %v843, %v370
  %v874 = vmul.f32 %v835, %v403
  %v875 = vmul.f32 %v836, %v410
  %v876 = vmul.f32 %v837, %v411
  %v877 = vmul.f32 %v838, %v412
  %v878 = vmul.f32 %v843, %v409
  %884 = vrot.lane.b32.xlu0 %v844, 127
  %v885 = vpop.permute.xlu0 %884
  %886 = vrot.lane.b32.xlu0 %v845, 127
  %v887 = vpop.permute.xlu0 %886
  %888 = vrot.lane.b32.xlu0 %v846, 127
  %v889 = vpop.permute.xlu0 %888
  %890 = vrot.lane.b32.xlu0 %v847, 127
  %v891 = vpop.permute.xlu0 %890
  %892 = vrot.lane.b32.xlu0 %v848, 127
  %v893 = vpop.permute.xlu0 %892
  %v894 = vsel %vm438, %v885, %v887
  %v895 = vsel %vm438, %v887, %v889
  %v896 = vsel %vm438, %v889, %v891
  %v897 = vsel %vm438, %v891, %v893
  %907 = vrot.lane.b32.xlu0 %v849, 126
  %v908 = vpop.permute.xlu0 %907
  %909 = vrot.lane.b32.xlu0 %v850, 126
  %v910 = vpop.permute.xlu0 %909
  %911 = vrot.lane.b32.xlu0 %v851, 126
  %v912 = vpop.permute.xlu0 %911
  %913 = vrot.lane.b32.xlu0 %v852, 126
  %v914 = vpop.permute.xlu0 %913
  %915 = vrot.lane.b32.xlu0 %v853, 126
  %v916 = vpop.permute.xlu0 %915
  %v917 = vsel %vm462, %v908, %v910
  %v918 = vsel %vm462, %v910, %v912
  %v919 = vsel %vm462, %v912, %v914
  %v920 = vsel %vm462, %v914, %v916
  %930 = vrot.lane.b32.xlu0 %v854, 112
  %v931 = vpop.permute.xlu0 %930
  %932 = vrot.lane.b32.xlu0 %v855, 112
  %v933 = vpop.permute.xlu0 %932
  %934 = vrot.lane.b32.xlu0 %v856, 112
  %v935 = vpop.permute.xlu0 %934
  %936 = vrot.lane.b32.xlu0 %v857, 112
  %v937 = vpop.permute.xlu0 %936
  %938 = vrot.lane.b32.xlu0 %v858, 112
  %v939 = vpop.permute.xlu0 %938
  %v940 = vsel %vm486, %v931, %v933
  %v941 = vsel %vm486, %v933, %v935
  %v942 = vsel %vm486, %v935, %v937
  %v943 = vsel %vm486, %v937, %v939
  %953 = vrot.lane.b32.xlu0 %v835, 111
  %v954 = vpop.permute.xlu0 %953
  %955 = vrot.lane.b32.xlu0 %v836, 111
  %v956 = vpop.permute.xlu0 %955
  %957 = vrot.lane.b32.xlu0 %v837, 111
  %v958 = vpop.permute.xlu0 %957
  %959 = vrot.lane.b32.xlu0 %v838, 111
  %v960 = vpop.permute.xlu0 %959
  %961 = vrot.lane.b32.xlu0 %v843, 111
  %v962 = vpop.permute.xlu0 %961
  %v963 = vsel %vm510, %v954, %v956
  %v964 = vsel %vm510, %v956, %v958
  %v965 = vsel %vm510, %v958, %v960
  %v966 = vsel %vm510, %v960, %v962
  %976 = vrot.lane.b32.xlu0 %v859, 110
  %v977 = vpop.permute.xlu0 %976
  %978 = vrot.lane.b32.xlu0 %v860, 110
  %v979 = vpop.permute.xlu0 %978
  %980 = vrot.lane.b32.xlu0 %v861, 110
  %v981 = vpop.permute.xlu0 %980
  %982 = vrot.lane.b32.xlu0 %v862, 110
  %v983 = vpop.permute.xlu0 %982
  %984 = vrot.lane.b32.xlu0 %v863, 110
  %v985 = vpop.permute.xlu0 %984
  %v986 = vsel %vm534, %v977, %v979
  %v987 = vsel %vm534, %v979, %v981
  %v988 = vsel %vm534, %v981, %v983
  %v989 = vsel %vm534, %v983, %v985
  %999 = vrot.lane.b32.xlu0 %v864, 96
  %v1000 = vpop.permute.xlu0 %999
  %1001 = vrot.lane.b32.xlu0 %v865, 96
  %v1002 = vpop.permute.xlu0 %1001
  %1003 = vrot.lane.b32.xlu0 %v866, 96
  %v1004 = vpop.permute.xlu0 %1003
  %1005 = vrot.lane.b32.xlu0 %v867, 96
  %v1006 = vpop.permute.xlu0 %1005
  %1007 = vrot.lane.b32.xlu0 %v868, 96
  %v1008 = vpop.permute.xlu0 %1007
  %v1009 = vsel %vm558, %v1000, %v1002
  %v1010 = vsel %vm558, %v1002, %v1004
  %v1011 = vsel %vm558, %v1004, %v1006
  %v1012 = vsel %vm558, %v1006, %v1008
  %1022 = vrot.lane.b32.xlu0 %v869, 95
  %v1023 = vpop.permute.xlu0 %1022
  %1024 = vrot.lane.b32.xlu0 %v870, 95
  %v1025 = vpop.permute.xlu0 %1024
  %1026 = vrot.lane.b32.xlu0 %v871, 95
  %v1027 = vpop.permute.xlu0 %1026
  %1028 = vrot.lane.b32.xlu0 %v872, 95
  %v1029 = vpop.permute.xlu0 %1028
  %1030 = vrot.lane.b32.xlu0 %v873, 95
  %v1031 = vpop.permute.xlu0 %1030
  %v1032 = vsel %vm582, %v1023, %v1025
  %v1033 = vsel %vm582, %v1025, %v1027
  %v1034 = vsel %vm582, %v1027, %v1029
  %v1035 = vsel %vm582, %v1029, %v1031
  %1045 = vrot.lane.b32.xlu0 %v874, 94
  %v1046 = vpop.permute.xlu0 %1045
  %1047 = vrot.lane.b32.xlu0 %v875, 94
  %v1048 = vpop.permute.xlu0 %1047
  %1049 = vrot.lane.b32.xlu0 %v876, 94
  %v1050 = vpop.permute.xlu0 %1049
  %1051 = vrot.lane.b32.xlu0 %v877, 94
  %v1052 = vpop.permute.xlu0 %1051
  %1053 = vrot.lane.b32.xlu0 %v878, 94
  %v1054 = vpop.permute.xlu0 %1053
  %v1055 = vsel %vm606, %v1046, %v1048
  %v1056 = vsel %vm606, %v1048, %v1050
  %v1057 = vsel %vm606, %v1050, %v1052
  %v1058 = vsel %vm606, %v1052, %v1054
  %v1063 = vld [vmem:[%s6] sm:$0xff]
  %v1065 = vsel %vm616, %v1063, 0
  %1067 = vmatprep.subr.mxu0 %v840
  %1068 = vmatpush1.msra.mxu0 %v839
  %1069 = vmatprep.subr.mxu0 %v895
  %1070 = vmatpush1.msra.mxu0 %v894
  %1071 = vmatprep.subr.mxu0 %v918
  %1072 = vmatpush1.msra.mxu0 %v917
  %1073 = vmatprep.subr.mxu0 %v941
  %1074 = vmatpush1.msra.mxu0 %v940
  %1075 = vmatprep.subr.mxu0 %v964
  %1076 = vmatpush1.msra.mxu0 %v963
  %1077 = vmatprep.subr.mxu0 %v987
  %1078 = vmatpush1.msra.mxu0 %v986
  %1079 = vmatprep.subr.mxu0 %v1010
  %1080 = vmatpush1.msra.mxu0 %v1009
  %1081 = vmatprep.subr.mxu0 %v1033
  %1082 = vmatpush1.msra.mxu0 %v1032
  %1083 = vmatprep.subr.mxu0 %v1056
  %1084 = vmatpush1.msra.mxu0 %v1055
  %1085 = vmatprep.subr.mxu0 0.0
  %1086 = vmatpush1.msra.mxu0 0.0
  %1087 = vmatprep.subr.mxu0 0.0
  %1088 = vmatpush1.msra.mxu0 0.0
  %1089 = vmatprep.subr.mxu0 0.0
  %1090 = vmatpush1.msra.mxu0 0.0
  %1091 = vmatprep.subr.mxu0 0.0
  %1092 = vmatpush1.msra.mxu0 0.0
  %1093 = vmatprep.subr.mxu0 0.0
  %1094 = vmatpush1.msra.mxu0 0.0
  %1095 = vmatprep.subr.mxu0 0.0
  %1096 = vmatpush1.msra.mxu0 0.0
  %1097 = vmatprep.subr.mxu0 0.0
  %1098 = vmatpush1.msra.mxu0 0.0
  %1099 = vmatprep.subr.mxu0 0.0
  %1100 = vmatpush1.msra.mxu0 0.0
  %1101 = vmatprep.subr.mxu0 0.0
  %1102 = vmatpush1.msra.mxu0 0.0
  %1103 = vmatprep.subr.mxu0 0.0
  %1104 = vmatpush1.msra.mxu0 0.0
  %1105 = vmatprep.subr.mxu0 0.0
  %1106 = vmatpush1.msra.mxu0 0.0
  %1107 = vmatprep.subr.mxu0 0.0
  %1108 = vmatpush1.msra.mxu0 0.0
  %1109 = vmatprep.subr.mxu0 0.0
  %1110 = vmatpush1.msra.mxu0 0.0
  %1111 = vmatprep.subr.mxu0 0.0
  %1112 = vmatpush1.msra.mxu0 0.0
  %1113 = vmatprep.subr.mxu0 0.0
  %1114 = vmatpush1.msra.mxu0 0.0
  %1115 = vmatprep.subr.mxu0 0.0
  %1116 = vmatpush1.msra.mxu0 0.0
  %1117 = vmatprep.subr.mxu0 0.0
  %1118 = vmatpush1.msra.mxu0 0.0
  %1119 = vmatprep.subr.mxu0 0.0
  %1120 = vmatpush1.msra.mxu0 0.0
  %1121 = vmatprep.subr.mxu0 0.0
  %1122 = vmatpush1.msra.mxu0 0.0
  %1123 = vmatprep.subr.mxu0 0.0
  %1124 = vmatpush1.msra.mxu0 0.0
  %1125 = vmatprep.subr.mxu0 0.0
  %1126 = vmatpush1.msra.mxu0 0.0
  %1127 = vmatprep.subr.mxu0 0.0
  %1128 = vmatpush1.msra.mxu0 0.0
  %1129 = vmatprep.subr.mxu0 0.0
  %1130 = vmatpush1.msra.mxu0 0.0
  %1131 = vmatprep.mubr.f32.mxu0 0.0
  %1132 = vmatmul.mubr.f32.gmra.mrb[0].mxu0 %v1065
  %v1133 = vpop.f32.mrb[0].mxu0
  %v1134 = vadd.f32 0.0, %v1133
  %v1135 = vpop.f32.mrb[0].mxu0
  %v1136 = vadd.f32 0.0, %v1135
  %1137 = vdwg.mxu0
  %1138 = vmatprep.subr.mxu0 %v842
  %1139 = vmatpush1.msra.mxu0 %v841
  %1140 = vmatprep.subr.mxu0 %v897
  %1141 = vmatpush1.msra.mxu0 %v896
  %1142 = vmatprep.subr.mxu0 %v920
  %1143 = vmatpush1.msra.mxu0 %v919
  %1144 = vmatprep.subr.mxu0 %v943
  %1145 = vmatpush1.msra.mxu0 %v942
  %1146 = vmatprep.subr.mxu0 %v966
  %1147 = vmatpush1.msra.mxu0 %v965
  %1148 = vmatprep.subr.mxu0 %v989
  %1149 = vmatpush1.msra.mxu0 %v988
  %1150 = vmatprep.subr.mxu0 %v1012
  %1151 = vmatpush1.msra.mxu0 %v1011
  %1152 = vmatprep.subr.mxu0 %v1035
  %1153 = vmatpush1.msra.mxu0 %v1034
  %1154 = vmatprep.subr.mxu0 %v1058
  %1155 = vmatpush1.msra.mxu0 %v1057
  %1156 = vmatprep.subr.mxu0 0.0
  %1157 = vmatpush1.msra.mxu0 0.0
  %1158 = vmatprep.subr.mxu0 0.0
  %1159 = vmatpush1.msra.mxu0 0.0
  %1160 = vmatprep.subr.mxu0 0.0
  %1161 = vmatpush1.msra.mxu0 0.0
  %1162 = vmatprep.subr.mxu0 0.0
  %1163 = vmatpush1.msra.mxu0 0.0
  %1164 = vmatprep.subr.mxu0 0.0
  %1165 = vmatpush1.msra.mxu0 0.0
  %1166 = vmatprep.subr.mxu0 0.0
  %1167 = vmatpush1.msra.mxu0 0.0
  %1168 = vmatprep.subr.mxu0 0.0
  %1169 = vmatpush1.msra.mxu0 0.0
  %1170 = vmatprep.subr.mxu0 0.0
  %1171 = vmatpush1.msra.mxu0 0.0
  %1172 = vmatprep.subr.mxu0 0.0
  %1173 = vmatpush1.msra.mxu0 0.0
  %1174 = vmatprep.subr.mxu0 0.0
  %1175 = vmatpush1.msra.mxu0 0.0
  %1176 = vmatprep.subr.mxu0 0.0
  %1177 = vmatpush1.msra.mxu0 0.0
  %1178 = vmatprep.subr.mxu0 0.0
  %1179 = vmatpush1.msra.mxu0 0.0
  %1180 = vmatprep.subr.mxu0 0.0
  %1181 = vmatpush1.msra.mxu0 0.0
  %1182 = vmatprep.subr.mxu0 0.0
  %1183 = vmatpush1.msra.mxu0 0.0
  %1184 = vmatprep.subr.mxu0 0.0
  %1185 = vmatpush1.msra.mxu0 0.0
  %1186 = vmatprep.subr.mxu0 0.0
  %1187 = vmatpush1.msra.mxu0 0.0
  %1188 = vmatprep.subr.mxu0 0.0
  %1189 = vmatpush1.msra.mxu0 0.0
  %1190 = vmatprep.subr.mxu0 0.0
  %1191 = vmatpush1.msra.mxu0 0.0
  %1192 = vmatprep.subr.mxu0 0.0
  %1193 = vmatpush1.msra.mxu0 0.0
  %1194 = vmatprep.subr.mxu0 0.0
  %1195 = vmatpush1.msra.mxu0 0.0
  %1196 = vmatprep.subr.mxu0 0.0
  %1197 = vmatpush1.msra.mxu0 0.0
  %1198 = vmatprep.subr.mxu0 0.0
  %1199 = vmatpush1.msra.mxu0 0.0
  %1200 = vmatprep.subr.mxu0 0.0
  %1201 = vmatpush1.msra.mxu0 0.0
  %1202 = vmatprep.mubr.f32.mxu0 0.0
  %1203 = vmatmul.mubr.f32.gmra.mrb[0].mxu0 %v1065
  %v1204 = vpop.f32.mrb[0].mxu0
  %v1205 = vadd.f32 0.0, %v1204
  %v1206 = vpop.f32.mrb[0].mxu0
  %v1207 = vadd.f32 0.0, %v1206
  %1208 = vdwg.mxu0
  %v1209 = vadd.f32 %v1134, %v1136
  %v1210 = vadd.f32 %v1209, %v1205
  %v1211 = vadd.f32 %v1210, %v1207
  %1212 = vadd.xlane.f32.xlu0 %v1211
  %v1213 = vpop.xlane.xlu0 %1212
  %v1214 = vmul.f32 %v1213, 0.001953125
  %v1215 = vsub.f32 %v1134, %v1214
  %v1216 = vsub.f32 %v1136, %v1214
  %v1217 = vsub.f32 %v1205, %v1214
  %v1218 = vsub.f32 %v1207, %v1214
  %v1219 = vmul.f32 %v1215, %v1215
  %v1220 = vmul.f32 %v1216, %v1216
  %v1221 = vmul.f32 %v1217, %v1217
  %v1222 = vmul.f32 %v1218, %v1218
  %v1223 = vadd.f32 %v1219, %v1220
  %v1224 = vadd.f32 %v1223, %v1221
  %v1225 = vadd.f32 %v1224, %v1222
  %1226 = vadd.xlane.f32.xlu0 %v1225
  %v1227 = vpop.xlane.xlu0 %1226
  %v1228 = vmul.f32 %v1227, 0.001953125
  %v1229 = vld [vmem:[%s7] sm:$0xff]
  %v1230 = vadd.f32 %v1228, 1e-05
  %v1231 = vrsqrt.pop %v1230
  %v1232 = vmul.f32 %v1229, %v1231
  %1234 = vset.pattern.permute.xlu0 0
  %1235 = vperm.xlu0 %1234, %v1232
  %v1236 = vpop.permute.xlu0 %1235
  %v1238 = vmul.f32 %v1215, %v1236
  %v1239 = vmul.f32 %v1216, %v1236
  %v1240 = vmul.f32 %v1217, %v1236
  %v1241 = vmul.f32 %v1218, %v1236
  %v1242 = vld [vmem:[%s8] sm:$0xff]
  %1244 = vset.pattern.permute.xlu0 0
  %1245 = vperm.xlu0 %1244, %v1242
  %v1246 = vpop.permute.xlu0 %1245
  %v1248 = vadd.f32 %v1238, %v1246
  %v1249 = vadd.f32 %v1239, %v1246
  %v1250 = vadd.f32 %v1240, %v1246
  %v1251 = vadd.f32 %v1241, %v1246
  %v1252 = vmax.f32 %v1248, 0.0
  %v1253 = vmax.f32 %v1249, 0.0
  %v1254 = vmax.f32 %v1250, 0.0
  %v1255 = vmax.f32 %v1251, 0.0
  %1260 = vrot.lane.b32.xlu0 %v1252, 17
  %v1261 = vpop.permute.xlu0 %1260
  %1262 = vrot.lane.b32.xlu0 %v1253, 17
  %v1263 = vpop.permute.xlu0 %1262
  %1264 = vrot.lane.b32.xlu0 %v1254, 17
  %v1265 = vpop.permute.xlu0 %1264
  %1266 = vrot.lane.b32.xlu0 %v1255, 17
  %v1267 = vpop.permute.xlu0 %1266
  %v1268 = vsel %vm61, %v1261, %v1263
  %v1269 = vsel %vm61, %v1263, %v1265
  %v1270 = vsel %vm61, %v1265, %v1267
  %1276 = vst.msk [vmem:[#allocation2] sm:$0xff] %vm829, %v1261
  %1277 = vst [vmem:[#allocation2 + $0x8] sm:$0xff] %v1268
  %1278 = vst [vmem:[#allocation2 + $0x10] sm:$0xff] %v1269
  %1279 = vst [vmem:[#allocation2 + $0x18] sm:$0xff] %v1270
  %1280 = vst.msk [vmem:[#allocation2 + $0x20] sm:$0xff] %vm61, %v1267
  %v1281 = vld [vmem:[#allocation2] sm:$0xff]
  %v1282 = vld [vmem:[#allocation2 + $0x8] sm:$0xff]
  %v1283 = vld [vmem:[#allocation2 + $0x10] sm:$0xff]
  %v1284 = vld [vmem:[#allocation2 + $0x18] sm:$0xff]
  %v1285 = vmul.f32 %v1281, %v129
  %v1286 = vmul.f32 %v1282, %v133
  %v1287 = vmul.f32 %v1283, %v137
  %v1288 = vmul.f32 %v1284, %v141
  %v1289 = vld [vmem:[#allocation2 + $0x20] sm:$0xff]
  %v1290 = vmul.f32 %v1281, %v169
  %v1291 = vmul.f32 %v1282, %v177
  %v1292 = vmul.f32 %v1283, %v178
  %v1293 = vmul.f32 %v1284, %v179
  %v1294 = vmul.f32 %v1289, %v175
  %v1295 = vmul.f32 %v1281, %v208
  %v1296 = vmul.f32 %v1282, %v216
  %v1297 = vmul.f32 %v1283, %v217
  %v1298 = vmul.f32 %v1284, %v218
  %v1299 = vmul.f32 %v1289, %v214
  %v1300 = vmul.f32 %v1281, %v247
  %v1301 = vmul.f32 %v1282, %v255
  %v1302 = vmul.f32 %v1283, %v256
  %v1303 = vmul.f32 %v1284, %v257
  %v1304 = vmul.f32 %v1289, %v253
  %v1305 = vmul.f32 %v1281, %v286
  %v1306 = vmul.f32 %v1282, %v294
  %v1307 = vmul.f32 %v1283, %v295
  %v1308 = vmul.f32 %v1284, %v296
  %v1309 = vmul.f32 %v1289, %v292
  %v1310 = vmul.f32 %v1281, %v325
  %v1311 = vmul.f32 %v1282, %v333
  %v1312 = vmul.f32 %v1283, %v334
  %v1313 = vmul.f32 %v1284, %v335
  %v1314 = vmul.f32 %v1289, %v331
  %v1315 = vmul.f32 %v1281, %v364
  %v1316 = vmul.f32 %v1282, %v372
  %v1317 = vmul.f32 %v1283, %v373
  %v1318 = vmul.f32 %v1284, %v374
  %v1319 = vmul.f32 %v1289, %v370
  %v1320 = vmul.f32 %v1281, %v403
  %v1321 = vmul.f32 %v1282, %v410
  %v1322 = vmul.f32 %v1283, %v411
  %v1323 = vmul.f32 %v1284, %v412
  %v1324 = vmul.f32 %v1289, %v409
  %1330 = vrot.lane.b32.xlu0 %v1290, 127
  %v1331 = vpop.permute.xlu0 %1330
  %1332 = vrot.lane.b32.xlu0 %v1291, 127
  %v1333 = vpop.permute.xlu0 %1332
  %1334 = vrot.lane.b32.xlu0 %v1292, 127
  %v1335 = vpop.permute.xlu0 %1334
  %1336 = vrot.lane.b32.xlu0 %v1293, 127
  %v1337 = vpop.permute.xlu0 %1336
  %1338 = vrot.lane.b32.xlu0 %v1294, 127
  %v1339 = vpop.permute.xlu0 %1338
  %v1340 = vsel %vm438, %v1331, %v1333
  %v1341 = vsel %vm438, %v1333, %v1335
  %v1342 = vsel %vm438, %v1335, %v1337
  %v1343 = vsel %vm438, %v1337, %v1339
  %1353 = vrot.lane.b32.xlu0 %v1295, 126
  %v1354 = vpop.permute.xlu0 %1353
  %1355 = vrot.lane.b32.xlu0 %v1296, 126
  %v1356 = vpop.permute.xlu0 %1355
  %1357 = vrot.lane.b32.xlu0 %v1297, 126
  %v1358 = vpop.permute.xlu0 %1357
  %1359 = vrot.lane.b32.xlu0 %v1298, 126
  %v1360 = vpop.permute.xlu0 %1359
  %1361 = vrot.lane.b32.xlu0 %v1299, 126
  %v1362 = vpop.permute.xlu0 %1361
  %v1363 = vsel %vm462, %v1354, %v1356
  %v1364 = vsel %vm462, %v1356, %v1358
  %v1365 = vsel %vm462, %v1358, %v1360
  %v1366 = vsel %vm462, %v1360, %v1362
  %1376 = vrot.lane.b32.xlu0 %v1300, 112
  %v1377 = vpop.permute.xlu0 %1376
  %1378 = vrot.lane.b32.xlu0 %v1301, 112
  %v1379 = vpop.permute.xlu0 %1378
  %1380 = vrot.lane.b32.xlu0 %v1302, 112
  %v1381 = vpop.permute.xlu0 %1380
  %1382 = vrot.lane.b32.xlu0 %v1303, 112
  %v1383 = vpop.permute.xlu0 %1382
  %1384 = vrot.lane.b32.xlu0 %v1304, 112
  %v1385 = vpop.permute.xlu0 %1384
  %v1386 = vsel %vm486, %v1377, %v1379
  %v1387 = vsel %vm486, %v1379, %v1381
  %v1388 = vsel %vm486, %v1381, %v1383
  %v1389 = vsel %vm486, %v1383, %v1385
  %1399 = vrot.lane.b32.xlu0 %v1281, 111
  %v1400 = vpop.permute.xlu0 %1399
  %1401 = vrot.lane.b32.xlu0 %v1282, 111
  %v1402 = vpop.permute.xlu0 %1401
  %1403 = vrot.lane.b32.xlu0 %v1283, 111
  %v1404 = vpop.permute.xlu0 %1403
  %1405 = vrot.lane.b32.xlu0 %v1284, 111
  %v1406 = vpop.permute.xlu0 %1405
  %1407 = vrot.lane.b32.xlu0 %v1289, 111
  %v1408 = vpop.permute.xlu0 %1407
  %v1409 = vsel %vm510, %v1400, %v1402
  %v1410 = vsel %vm510, %v1402, %v1404
  %v1411 = vsel %vm510, %v1404, %v1406
  %v1412 = vsel %vm510, %v1406, %v1408
  %1422 = vrot.lane.b32.xlu0 %v1305, 110
  %v1423 = vpop.permute.xlu0 %1422
  %1424 = vrot.lane.b32.xlu0 %v1306, 110
  %v1425 = vpop.permute.xlu0 %1424
  %1426 = vrot.lane.b32.xlu0 %v1307, 110
  %v1427 = vpop.permute.xlu0 %1426
  %1428 = vrot.lane.b32.xlu0 %v1308, 110
  %v1429 = vpop.permute.xlu0 %1428
  %1430 = vrot.lane.b32.xlu0 %v1309, 110
  %v1431 = vpop.permute.xlu0 %1430
  %v1432 = vsel %vm534, %v1423, %v1425
  %v1433 = vsel %vm534, %v1425, %v1427
  %v1434 = vsel %vm534, %v1427, %v1429
  %v1435 = vsel %vm534, %v1429, %v1431
  %1445 = vrot.lane.b32.xlu0 %v1310, 96
  %v1446 = vpop.permute.xlu0 %1445
  %1447 = vrot.lane.b32.xlu0 %v1311, 96
  %v1448 = vpop.permute.xlu0 %1447
  %1449 = vrot.lane.b32.xlu0 %v1312, 96
  %v1450 = vpop.permute.xlu0 %1449
  %1451 = vrot.lane.b32.xlu0 %v1313, 96
  %v1452 = vpop.permute.xlu0 %1451
  %1453 = vrot.lane.b32.xlu0 %v1314, 96
  %v1454 = vpop.permute.xlu0 %1453
  %v1455 = vsel %vm558, %v1446, %v1448
  %v1456 = vsel %vm558, %v1448, %v1450
  %v1457 = vsel %vm558, %v1450, %v1452
  %v1458 = vsel %vm558, %v1452, %v1454
  %1468 = vrot.lane.b32.xlu0 %v1315, 95
  %v1469 = vpop.permute.xlu0 %1468
  %1470 = vrot.lane.b32.xlu0 %v1316, 95
  %v1471 = vpop.permute.xlu0 %1470
  %1472 = vrot.lane.b32.xlu0 %v1317, 95
  %v1473 = vpop.permute.xlu0 %1472
  %1474 = vrot.lane.b32.xlu0 %v1318, 95
  %v1475 = vpop.permute.xlu0 %1474
  %1476 = vrot.lane.b32.xlu0 %v1319, 95
  %v1477 = vpop.permute.xlu0 %1476
  %v1478 = vsel %vm582, %v1469, %v1471
  %v1479 = vsel %vm582, %v1471, %v1473
  %v1480 = vsel %vm582, %v1473, %v1475
  %v1481 = vsel %vm582, %v1475, %v1477
  %1491 = vrot.lane.b32.xlu0 %v1320, 94
  %v1492 = vpop.permute.xlu0 %1491
  %1493 = vrot.lane.b32.xlu0 %v1321, 94
  %v1494 = vpop.permute.xlu0 %1493
  %1495 = vrot.lane.b32.xlu0 %v1322, 94
  %v1496 = vpop.permute.xlu0 %1495
  %1497 = vrot.lane.b32.xlu0 %v1323, 94
  %v1498 = vpop.permute.xlu0 %1497
  %1499 = vrot.lane.b32.xlu0 %v1324, 94
  %v1500 = vpop.permute.xlu0 %1499
  %v1501 = vsel %vm606, %v1492, %v1494
  %v1502 = vsel %vm606, %v1494, %v1496
  %v1503 = vsel %vm606, %v1496, %v1498
  %v1504 = vsel %vm606, %v1498, %v1500
  %v1509 = vld [vmem:[%s9] sm:$0xff]
  %v1511 = vsel %vm616, %v1509, 0
  %1513 = vmatprep.subr.mxu0 %v1286
  %1514 = vmatpush1.msra.mxu0 %v1285
  %1515 = vmatprep.subr.mxu0 %v1341
  %1516 = vmatpush1.msra.mxu0 %v1340
  %1517 = vmatprep.subr.mxu0 %v1364
  %1518 = vmatpush1.msra.mxu0 %v1363
  %1519 = vmatprep.subr.mxu0 %v1387
  %1520 = vmatpush1.msra.mxu0 %v1386
  %1521 = vmatprep.subr.mxu0 %v1410
  %1522 = vmatpush1.msra.mxu0 %v1409
  %1523 = vmatprep.subr.mxu0 %v1433
  %1524 = vmatpush1.msra.mxu0 %v1432
  %1525 = vmatprep.subr.mxu0 %v1456
  %1526 = vmatpush1.msra.mxu0 %v1455
  %1527 = vmatprep.subr.mxu0 %v1479
  %1528 = vmatpush1.msra.mxu0 %v1478
  %1529 = vmatprep.subr.mxu0 %v1502
  %1530 = vmatpush1.msra.mxu0 %v1501
  %1531 = vmatprep.subr.mxu0 0.0
  %1532 = vmatpush1.msra.mxu0 0.0
  %1533 = vmatprep.subr.mxu0 0.0
  %1534 = vmatpush1.msra.mxu0 0.0
  %1535 = vmatprep.subr.mxu0 0.0
  %1536 = vmatpush1.msra.mxu0 0.0
  %1537 = vmatprep.subr.mxu0 0.0
  %1538 = vmatpush1.msra.mxu0 0.0
  %1539 = vmatprep.subr.mxu0 0.0
  %1540 = vmatpush1.msra.mxu0 0.0
  %1541 = vmatprep.subr.mxu0 0.0
  %1542 = vmatpush1.msra.mxu0 0.0
  %1543 = vmatprep.subr.mxu0 0.0
  %1544 = vmatpush1.msra.mxu0 0.0
  %1545 = vmatprep.subr.mxu0 0.0
  %1546 = vmatpush1.msra.mxu0 0.0
  %1547 = vmatprep.subr.mxu0 0.0
  %1548 = vmatpush1.msra.mxu0 0.0
  %1549 = vmatprep.subr.mxu0 0.0
  %1550 = vmatpush1.msra.mxu0 0.0
  %1551 = vmatprep.subr.mxu0 0.0
  %1552 = vmatpush1.msra.mxu0 0.0
  %1553 = vmatprep.subr.mxu0 0.0
  %1554 = vmatpush1.msra.mxu0 0.0
  %1555 = vmatprep.subr.mxu0 0.0
  %1556 = vmatpush1.msra.mxu0 0.0
  %1557 = vmatprep.subr.mxu0 0.0
  %1558 = vmatpush1.msra.mxu0 0.0
  %1559 = vmatprep.subr.mxu0 0.0
  %1560 = vmatpush1.msra.mxu0 0.0
  %1561 = vmatprep.subr.mxu0 0.0
  %1562 = vmatpush1.msra.mxu0 0.0
  %1563 = vmatprep.subr.mxu0 0.0
  %1564 = vmatpush1.msra.mxu0 0.0
  %1565 = vmatprep.subr.mxu0 0.0
  %1566 = vmatpush1.msra.mxu0 0.0
  %1567 = vmatprep.subr.mxu0 0.0
  %1568 = vmatpush1.msra.mxu0 0.0
  %1569 = vmatprep.subr.mxu0 0.0
  %1570 = vmatpush1.msra.mxu0 0.0
  %1571 = vmatprep.subr.mxu0 0.0
  %1572 = vmatpush1.msra.mxu0 0.0
  %1573 = vmatprep.subr.mxu0 0.0
  %1574 = vmatpush1.msra.mxu0 0.0
  %1575 = vmatprep.subr.mxu0 0.0
  %1576 = vmatpush1.msra.mxu0 0.0
  %1577 = vmatprep.mubr.f32.mxu0 0.0
  %1578 = vmatmul.mubr.f32.gmra.mrb[0].mxu0 %v1511
  %v1579 = vpop.f32.mrb[0].mxu0
  %v1580 = vadd.f32 0.0, %v1579
  %v1581 = vpop.f32.mrb[0].mxu0
  %v1582 = vadd.f32 0.0, %v1581
  %1583 = vdwg.mxu0
  %1584 = vmatprep.subr.mxu0 %v1288
  %1585 = vmatpush1.msra.mxu0 %v1287
  %1586 = vmatprep.subr.mxu0 %v1343
  %1587 = vmatpush1.msra.mxu0 %v1342
  %1588 = vmatprep.subr.mxu0 %v1366
  %1589 = vmatpush1.msra.mxu0 %v1365
  %1590 = vmatprep.subr.mxu0 %v1389
  %1591 = vmatpush1.msra.mxu0 %v1388
  %1592 = vmatprep.subr.mxu0 %v1412
  %1593 = vmatpush1.msra.mxu0 %v1411
  %1594 = vmatprep.subr.mxu0 %v1435
  %1595 = vmatpush1.msra.mxu0 %v1434
  %1596 = vmatprep.subr.mxu0 %v1458
  %1597 = vmatpush1.msra.mxu0 %v1457
  %1598 = vmatprep.subr.mxu0 %v1481
  %1599 = vmatpush1.msra.mxu0 %v1480
  %1600 = vmatprep.subr.mxu0 %v1504
  %1601 = vmatpush1.msra.mxu0 %v1503
  %1602 = vmatprep.subr.mxu0 0.0
  %1603 = vmatpush1.msra.mxu0 0.0
  %1604 = vmatprep.subr.mxu0 0.0
  %1605 = vmatpush1.msra.mxu0 0.0
  %1606 = vmatprep.subr.mxu0 0.0
  %1607 = vmatpush1.msra.mxu0 0.0
  %1608 = vmatprep.subr.mxu0 0.0
  %1609 = vmatpush1.msra.mxu0 0.0
  %1610 = vmatprep.subr.mxu0 0.0
  %1611 = vmatpush1.msra.mxu0 0.0
  %1612 = vmatprep.subr.mxu0 0.0
  %1613 = vmatpush1.msra.mxu0 0.0
  %1614 = vmatprep.subr.mxu0 0.0
  %1615 = vmatpush1.msra.mxu0 0.0
  %1616 = vmatprep.subr.mxu0 0.0
  %1617 = vmatpush1.msra.mxu0 0.0
  %1618 = vmatprep.subr.mxu0 0.0
  %1619 = vmatpush1.msra.mxu0 0.0
  %1620 = vmatprep.subr.mxu0 0.0
  %1621 = vmatpush1.msra.mxu0 0.0
  %1622 = vmatprep.subr.mxu0 0.0
  %1623 = vmatpush1.msra.mxu0 0.0
  %1624 = vmatprep.subr.mxu0 0.0
  %1625 = vmatpush1.msra.mxu0 0.0
  %1626 = vmatprep.subr.mxu0 0.0
  %1627 = vmatpush1.msra.mxu0 0.0
  %1628 = vmatprep.subr.mxu0 0.0
  %1629 = vmatpush1.msra.mxu0 0.0
  %1630 = vmatprep.subr.mxu0 0.0
  %1631 = vmatpush1.msra.mxu0 0.0
  %1632 = vmatprep.subr.mxu0 0.0
  %1633 = vmatpush1.msra.mxu0 0.0
  %1634 = vmatprep.subr.mxu0 0.0
  %1635 = vmatpush1.msra.mxu0 0.0
  %1636 = vmatprep.subr.mxu0 0.0
  %1637 = vmatpush1.msra.mxu0 0.0
  %1638 = vmatprep.subr.mxu0 0.0
  %1639 = vmatpush1.msra.mxu0 0.0
  %1640 = vmatprep.subr.mxu0 0.0
  %1641 = vmatpush1.msra.mxu0 0.0
  %1642 = vmatprep.subr.mxu0 0.0
  %1643 = vmatpush1.msra.mxu0 0.0
  %1644 = vmatprep.subr.mxu0 0.0
  %1645 = vmatpush1.msra.mxu0 0.0
  %1646 = vmatprep.subr.mxu0 0.0
  %1647 = vmatpush1.msra.mxu0 0.0
  %1648 = vmatprep.mubr.f32.mxu0 0.0
  %1649 = vmatmul.mubr.f32.gmra.mrb[0].mxu0 %v1511
  %v1650 = vpop.f32.mrb[0].mxu0
  %v1651 = vadd.f32 0.0, %v1650
  %v1652 = vpop.f32.mrb[0].mxu0
  %v1653 = vadd.f32 0.0, %v1652
  %1654 = vdwg.mxu0
  %v1655 = vadd.f32 %v1580, %v1582
  %v1656 = vadd.f32 %v1655, %v1651
  %v1657 = vadd.f32 %v1656, %v1653
  %1658 = vadd.xlane.f32.xlu0 %v1657
  %v1659 = vpop.xlane.xlu0 %1658
  %v1660 = vmul.f32 %v1659, 0.001953125
  %v1661 = vsub.f32 %v1580, %v1660
  %v1662 = vsub.f32 %v1582, %v1660
  %v1663 = vsub.f32 %v1651, %v1660
  %v1664 = vsub.f32 %v1653, %v1660
  %v1665 = vmul.f32 %v1661, %v1661
  %v1666 = vmul.f32 %v1662, %v1662
  %v1667 = vmul.f32 %v1663, %v1663
  %v1668 = vmul.f32 %v1664, %v1664
  %v1669 = vadd.f32 %v1665, %v1666
  %v1670 = vadd.f32 %v1669, %v1667
  %v1671 = vadd.f32 %v1670, %v1668
  %1672 = vadd.xlane.f32.xlu0 %v1671
  %v1673 = vpop.xlane.xlu0 %1672
  %v1674 = vmul.f32 %v1673, 0.001953125
  %v1675 = vld [vmem:[%s10] sm:$0xff]
  %v1676 = vadd.f32 %v1674, 1e-05
  %v1677 = vrsqrt.pop %v1676
  %v1678 = vmul.f32 %v1675, %v1677
  %1680 = vset.pattern.permute.xlu0 0
  %1681 = vperm.xlu0 %1680, %v1678
  %v1682 = vpop.permute.xlu0 %1681
  %v1684 = vmul.f32 %v1661, %v1682
  %v1685 = vmul.f32 %v1662, %v1682
  %v1686 = vmul.f32 %v1663, %v1682
  %v1687 = vmul.f32 %v1664, %v1682
  %v1688 = vld [vmem:[%s11] sm:$0xff]
  %1690 = vset.pattern.permute.xlu0 0
  %1691 = vperm.xlu0 %1690, %v1688
  %v1692 = vpop.permute.xlu0 %1691
  %v1694 = vadd.f32 %v1684, %v1692
  %v1695 = vadd.f32 %v1685, %v1692
  %v1696 = vadd.f32 %v1686, %v1692
  %v1697 = vadd.f32 %v1687, %v1692
  %v1698 = vmax.f32 %v1694, 0.0
  %v1699 = vmax.f32 %v1695, 0.0
  %v1700 = vmax.f32 %v1696, 0.0
  %v1701 = vmax.f32 %v1697, 0.0
  %1702 = vst [vmem:[%s12] sm:$0xff] %v1698
  %1703 = vst [vmem:[%s12 + $0x8] sm:$0xff] %v1699
  %1704 = vst [vmem:[%s12 + $0x10] sm:$0xff] %v1700
  %1705 = vst [vmem:[%s12 + $0x18] sm:$0xff] %v1701
  // Predicated region
  $region50: #{decoder_forward.1} parent=0 // pred_check
    _
  $region51: #{decoder_forward.1} parent=0 // pred_check_branch
    %1707 = sbr.rel (0) target = $region53
  $region52: #{decoder_forward.1} parent=0 // pred_region
    _
  $region53: #{decoder_forward.1} parent=0 // pred_fallthru
    _
  // Predicated region
  $region54: #{decoder_forward.1} parent=0 // pred_check
    _
  $region55: #{decoder_forward.1} parent=0 // pred_check_branch
    %1709 = sbr.rel (0) target = $region57
  $region56: #{decoder_forward.1} parent=0 // pred_region
    _
  $region57: #{decoder_forward.1} parent=0 // pred_fallthru
    _

</llo_original>
